<compile_context>
chip_gen: v7x
topology: tpu7x:2x2x1
jax: 0.10.0
libtpu: 0.0.40
codegen_flags: <defaults>
</compile_context>

<pallas_src>
import jax
import jax.numpy as jnp
from jax.experimental import pallas as pl
from jax.experimental.pallas import tpu as pltpu


def _summarizer_kernel(clss_ref, mask_ref, w_ref, b_ref, x_hbm, out_ref,
                       sents_buf, sem):
    """One grid step = Bb batches.

    clss_ref : SMEM (B, N) int32     scalar-prefetched [CLS] positions, clamped to [0, S)
    mask_ref : VMEM (Bb, 1, N) f32   mask_cls block (N on lanes)
    w_ref    : VMEM (1, H) f32       classifier weight
    b_ref    : SMEM (1,) f32         classifier bias
    x_hbm    : ANY  (B, S, H)        activations, left in HBM
    out_ref  : VMEM (Bb, 1, N) f32   sentence scores (N on lanes)
    sents_buf: VMEM (2, Bb, N, H)    double-buffered gather destination (x.dtype)
    sem      : DMA  (2,)             one shared DMA semaphore per buffer slot
    """
    g = pl.program_id(0)
    n_steps = pl.num_programs(0)
    _, Bb, N, H = sents_buf.shape
    B = x_hbm.shape[0]

    def issue_gathers(step, slot):
        # Issue all Bb*N row gathers for grid step `step` into buffer slot `slot`.
        # All copies of a slot share one DMA semaphore (fixed sem count).
        for bb in range(Bb):
            b = jnp.minimum(step * Bb + bb, B - 1)   # clamp padded tail batches
            for j in range(N):
                pos = clss_ref[b, j]                 # clamped in the wrapper
                pltpu.make_async_copy(
                    x_hbm.at[b, pl.ds(pos, 1), :],           # (1, H) row in HBM
                    sents_buf.at[slot, bb, pl.ds(j, 1), :],  # (1, H) row in VMEM
                    sem.at[slot],
                ).start()

    # Prime the pipeline: the very first step has nothing prefetched for it.
    @pl.when(g == 0)
    def _():
        issue_gathers(0, 0)

    slot = g % 2
    next_slot = (g + 1) % 2

    # Cross-step prefetch: issue next step's gathers *before* waiting on the
    # current slot, so their latency hides behind this step's wait + compute.
    @pl.when(g + 1 < n_steps)
    def _():
        issue_gathers(g + 1, next_slot)

    # Wait for the Bb*N row copies populating `slot`. Reconstructed descriptors
    # of identical (1, H) size on the same semaphore are valid wait handles.
    for _ in range(Bb * N):
        pltpu.make_async_copy(
            x_hbm.at[0, pl.ds(0, 1), :],
            sents_buf.at[slot, 0, pl.ds(0, 1), :],
            sem.at[slot],
        ).wait()

    # Classifier head without an M=1 MXU matmul:
    #   d[b, j] = x[b, clss[b, j]] . w          (VPU multiply + lane reduction)
    #   scores  = where(mask, sigmoid(d + bias), 0)
    # (identical to sigmoid((mask*sents) @ W^T + b) * mask for a {0,1} mask,
    #  and sanitizes any garbage in masked rows — no NaN can leak.)
    s = sents_buf[slot].astype(jnp.float32)          # (Bb, N, H)
    w = w_ref[0].astype(jnp.float32)                 # (H,)
    d = jnp.sum(s * w, axis=-1)                      # (Bb, N)  — N on lanes
    m = mask_ref[:, 0, :]                            # (Bb, N)
    out_ref[:, 0, :] = jnp.where(m > 0, jax.nn.sigmoid(d + b_ref[0]), 0.0)


def new_summarizer_forward(x, clss, mask_cls, weight, bias, *, batch_block=None):
    """x: (B,S,H) float; clss: (B,N) int; mask_cls: (B,N) bool/{0,1};
    weight: (1,H); bias: (1,). Returns (sent_scores (B,N) f32, mask_cls)."""
    B, S, H = x.shape
    N = clss.shape[1]

    # Batch tile: keep >= 2 grid steps when B >= 2 (pipelining headroom), and cap
    # the double-buffered scratch (2*Bb*N*H*itemsize) well under scoped VMEM
    # (v7x default 32 MiB), so a Bb tuned on v5e/v6e cannot OOM on v7x.
    itemsize = max(jnp.dtype(x.dtype).itemsize, 4)
    vmem_budget = 8 * 1024 * 1024
    bb_cap = max(1, vmem_budget // (2 * N * H * itemsize))
    Bb = batch_block if batch_block is not None else max(1, min(bb_cap, -(-B // 2)))
    Bb = max(1, min(Bb, B))
    n_steps = -(-B // Bb)
    B_pad = n_steps * Bb

    # Clamp [CLS] indices — they become DMA source addresses in-kernel. Padded /
    # masked entries then gather a valid row which the mask zeroes out.
    clss_c = jnp.clip(clss.astype(jnp.int32), 0, S - 1)

    mask3 = mask_cls.astype(jnp.float32).reshape(B, 1, N)        # N on lanes
    if B_pad > B:
        mask3 = jnp.pad(mask3, ((0, B_pad - B), (0, 0), (0, 0)))
    w = weight.astype(jnp.float32).reshape(1, H)
    bvec = bias.astype(jnp.float32).reshape(1)

    out = pl.pallas_call(
        _summarizer_kernel,
        out_shape=jax.ShapeDtypeStruct((B_pad, 1, N), jnp.float32),
        grid_spec=pltpu.PrefetchScalarGridSpec(
            num_scalar_prefetch=1,                                   # clss -> SMEM
            grid=(n_steps,),
            in_specs=[
                pl.BlockSpec((Bb, 1, N), lambda g, clss: (g, 0, 0)),   # mask_cls
                pl.BlockSpec((1, H), lambda g, clss: (0, 0)),          # weight
                pl.BlockSpec(memory_space=pltpu.MemorySpace.SMEM),     # bias scalar
                pl.BlockSpec(memory_space=pl.ANY),                     # x stays in HBM
            ],
            out_specs=pl.BlockSpec((Bb, 1, N), lambda g, clss: (g, 0, 0)),
            scratch_shapes=[
                pltpu.VMEM((2, Bb, N, H), x.dtype),    # double-buffered [CLS] rows
                pltpu.SemaphoreType.DMA((2,)),         # one shared sem per slot
            ],
        ),
        compiler_params=pltpu.CompilerParams(
            # "arbitrary": the cross-step prefetch carries manual-DMA state across
            # grid steps, which is only valid under sequential execution of the axis.
            dimension_semantics=("arbitrary",),
            vmem_limit_bytes=32 * 1024 * 1024,
        ),
    )(clss_c, mask3, w, bvec, x)

    sent_scores = out[:B, 0, :]
    return sent_scores, mask_cls


def _reference(x, clss, mask_cls, weight, bias):
    top_vec = x.astype(jnp.float32)
    B = x.shape[0]
    sents_vec = top_vec[jnp.arange(B)[:, None], clss]                # (B, N, H)
    sents_vec = sents_vec * mask_cls[:, :, None].astype(jnp.float32)
    h = jnp.einsum('bnh,oh->bno', sents_vec, weight) + bias          # (B, N, 1)
    return jax.nn.sigmoid(h)[..., 0] * mask_cls.astype(jnp.float32)


if __name__ == "__main__":
    # Small shapes consistent with the forward (hidden=768 in the real model).
    B, S, H, N = 2, 16, 128, 8

    key = jax.random.PRNGKey(0)
    kx, kc, km, kw, kb = jax.random.split(key, 5)

    x = jax.random.normal(kx, (B, S, H), dtype=jnp.float32)
    clss = jnp.sort(jax.random.randint(kc, (B, N), 0, S), axis=-1).astype(jnp.int32)
    mask_cls = jax.random.bernoulli(km, 0.8, (B, N))

    # Deterministic Classifier(H) params: Linear(H, 1), xavier-uniform-ish init.
    limit = (6.0 / (H + 1)) ** 0.5
    weight = jax.random.uniform(kw, (1, H), jnp.float32, -limit, limit)
    bias = jax.random.uniform(kb, (1,), jnp.float32, -0.1, 0.1)

    sent_scores, mask_out = new_summarizer_forward(x, clss, mask_cls, weight, bias)
    jax.block_until_ready(sent_scores)

    ref = _reference(x, clss, mask_cls, weight, bias)
    assert sent_scores.shape == (B, N)
    assert jnp.allclose(sent_scores, ref, atol=1e-5), "mismatch vs reference"
    assert bool(jnp.all(mask_out == mask_cls))

    print("KERNEL_OK")
</pallas_src>

<mosaic_0001>
module attributes {stable_mosaic.version = 11 : i64} {
  func.func @_summarizer_kernel(%arg0: i32, %arg1: memref<2x8xi32, #tpu.memory_space<smem>>, %arg2: memref<1x1x8xf32, #tpu.memory_space<vmem>>, %arg3: memref<1x128xf32, #tpu.memory_space<vmem>>, %arg4: memref<1xf32, #tpu.memory_space<smem>>, %arg5: memref<2x16x128xf32, #tpu.memory_space<any>>, %arg6: memref<1x1x8xf32, #tpu.memory_space<vmem>>, %arg7: memref<2x1x8x128xf32, #tpu.memory_space<vmem>>, %arg8: memref<2x!tpu.dma_semaphore, #tpu.memory_space<semaphore_mem>>) attributes {dimension_semantics = [#tpu.dimension_semantics<arbitrary>], iteration_bounds = array<i64: 2>, scalar_prefetch = 1 : i64, scratch_operands = 2 : i64, tpu.core_type = #tpu.core_type<tc>, window_params = [{transform_indices = @transform_0, window_bounds = array<i64: 1, 1, 8>}, {pipeline_mode = #tpu.pipeline_mode<synchronous>, transform_indices = @transform_1, window_bounds = array<i64: 1, 128>}, {transform_indices = @transform_2, window_bounds = array<i64: 1>}, {}, {transform_indices = @transform_4, window_bounds = array<i64: 1, 1, 8>}]} {
    %c0_i32 = arith.constant 0 : i32
    %0 = arith.cmpi eq, %arg0, %c0_i32 : i32
    %1 = arith.extui %0 : i1 to i32
    %c0_i32_0 = arith.constant 0 : i32
    %2 = arith.cmpi ne, %1, %c0_i32_0 : i32
    scf.if %2 {
      %c0_i32_77 = arith.constant 0 : i32
      %c1_i32_78 = arith.constant 1 : i32
      %102 = arith.minsi %c0_i32_77, %c1_i32_78 : i32
      %103 = arith.index_cast %102 : i32 to index
      %c0_79 = arith.constant 0 : index
      %104 = memref.load %arg1[%103, %c0_79] : memref<2x8xi32, #tpu.memory_space<smem>>
      %c0_i32_80 = arith.constant 0 : i32
      %c0_i32_81 = arith.constant 0 : i32
      %c0_i32_82 = arith.constant 0 : i32
      %c0_i32_83 = arith.constant 0 : i32
      %105 = tpu.memref_slice %arg5[%102, %104, %c0_i32_83] : memref<2x16x128xf32, #tpu.memory_space<any>> -> memref<1x1x128xf32, #tpu.memory_space<any>>
      %106 = tpu.memref_squeeze %105 : memref<1x1x128xf32, #tpu.memory_space<any>> -> memref<1x128xf32, #tpu.memory_space<any>>
      %c0_i32_84 = arith.constant 0 : i32
      %c0_i32_85 = arith.constant 0 : i32
      %107 = tpu.memref_slice %arg7[%c0_i32_80, %c0_i32_81, %c0_i32_84, %c0_i32_85] : memref<2x1x8x128xf32, #tpu.memory_space<vmem>> -> memref<1x1x1x128xf32, #tpu.memory_space<vmem>>
      %108 = tpu.memref_squeeze %107 : memref<1x1x1x128xf32, #tpu.memory_space<vmem>> -> memref<1x128xf32, #tpu.memory_space<vmem>>
      %109 = tpu.memref_slice %arg8[%c0_i32_82] : memref<2x!tpu.dma_semaphore, #tpu.memory_space<semaphore_mem>> -> memref<1x!tpu.dma_semaphore, #tpu.memory_space<semaphore_mem>>
      %110 = tpu.memref_squeeze %109 : memref<1x!tpu.dma_semaphore, #tpu.memory_space<semaphore_mem>> -> memref<!tpu.dma_semaphore, #tpu.memory_space<semaphore_mem>>
      tpu.enqueue_dma source(%106 : memref<1x128xf32, #tpu.memory_space<any>>) target(%108 : memref<1x128xf32, #tpu.memory_space<vmem>>) target_semaphore(%110 : memref<!tpu.dma_semaphore, #tpu.memory_space<semaphore_mem>>)
      %111 = arith.index_cast %102 : i32 to index
      %c1 = arith.constant 1 : index
      %112 = memref.load %arg1[%111, %c1] : memref<2x8xi32, #tpu.memory_space<smem>>
      %c0_i32_86 = arith.constant 0 : i32
      %c0_i32_87 = arith.constant 0 : i32
      %c0_i32_88 = arith.constant 0 : i32
      %c0_i32_89 = arith.constant 0 : i32
      %113 = tpu.memref_slice %arg5[%102, %112, %c0_i32_89] : memref<2x16x128xf32, #tpu.memory_space<any>> -> memref<1x1x128xf32, #tpu.memory_space<any>>
      %114 = tpu.memref_squeeze %113 : memref<1x1x128xf32, #tpu.memory_space<any>> -> memref<1x128xf32, #tpu.memory_space<any>>
      %c1_i32_90 = arith.constant 1 : i32
      %c0_i32_91 = arith.constant 0 : i32
      %115 = tpu.memref_slice %arg7[%c0_i32_86, %c0_i32_87, %c1_i32_90, %c0_i32_91] : memref<2x1x8x128xf32, #tpu.memory_space<vmem>> -> memref<1x1x1x128xf32, #tpu.memory_space<vmem>>
      %116 = tpu.memref_squeeze %115 : memref<1x1x1x128xf32, #tpu.memory_space<vmem>> -> memref<1x128xf32, #tpu.memory_space<vmem>>
      %117 = tpu.memref_slice %arg8[%c0_i32_88] : memref<2x!tpu.dma_semaphore, #tpu.memory_space<semaphore_mem>> -> memref<1x!tpu.dma_semaphore, #tpu.memory_space<semaphore_mem>>
      %118 = tpu.memref_squeeze %117 : memref<1x!tpu.dma_semaphore, #tpu.memory_space<semaphore_mem>> -> memref<!tpu.dma_semaphore, #tpu.memory_space<semaphore_mem>>
      tpu.enqueue_dma source(%114 : memref<1x128xf32, #tpu.memory_space<any>>) target(%116 : memref<1x128xf32, #tpu.memory_space<vmem>>) target_semaphore(%118 : memref<!tpu.dma_semaphore, #tpu.memory_space<semaphore_mem>>)
      %119 = arith.index_cast %102 : i32 to index
      %c2 = arith.constant 2 : index
      %120 = memref.load %arg1[%119, %c2] : memref<2x8xi32, #tpu.memory_space<smem>>
      %c0_i32_92 = arith.constant 0 : i32
      %c0_i32_93 = arith.constant 0 : i32
      %c0_i32_94 = arith.constant 0 : i32
      %c0_i32_95 = arith.constant 0 : i32
      %121 = tpu.memref_slice %arg5[%102, %120, %c0_i32_95] : memref<2x16x128xf32, #tpu.memory_space<any>> -> memref<1x1x128xf32, #tpu.memory_space<any>>
      %122 = tpu.memref_squeeze %121 : memref<1x1x128xf32, #tpu.memory_space<any>> -> memref<1x128xf32, #tpu.memory_space<any>>
      %c2_i32_96 = arith.constant 2 : i32
      %c0_i32_97 = arith.constant 0 : i32
      %123 = tpu.memref_slice %arg7[%c0_i32_92, %c0_i32_93, %c2_i32_96, %c0_i32_97] : memref<2x1x8x128xf32, #tpu.memory_space<vmem>> -> memref<1x1x1x128xf32, #tpu.memory_space<vmem>>
      %124 = tpu.memref_squeeze %123 : memref<1x1x1x128xf32, #tpu.memory_space<vmem>> -> memref<1x128xf32, #tpu.memory_space<vmem>>
      %125 = tpu.memref_slice %arg8[%c0_i32_94] : memref<2x!tpu.dma_semaphore, #tpu.memory_space<semaphore_mem>> -> memref<1x!tpu.dma_semaphore, #tpu.memory_space<semaphore_mem>>
      %126 = tpu.memref_squeeze %125 : memref<1x!tpu.dma_semaphore, #tpu.memory_space<semaphore_mem>> -> memref<!tpu.dma_semaphore, #tpu.memory_space<semaphore_mem>>
      tpu.enqueue_dma source(%122 : memref<1x128xf32, #tpu.memory_space<any>>) target(%124 : memref<1x128xf32, #tpu.memory_space<vmem>>) target_semaphore(%126 : memref<!tpu.dma_semaphore, #tpu.memory_space<semaphore_mem>>)
      %127 = arith.index_cast %102 : i32 to index
      %c3 = arith.constant 3 : index
      %128 = memref.load %arg1[%127, %c3] : memref<2x8xi32, #tpu.memory_space<smem>>
      %c0_i32_98 = arith.constant 0 : i32
      %c0_i32_99 = arith.constant 0 : i32
      %c0_i32_100 = arith.constant 0 : i32
      %c0_i32_101 = arith.constant 0 : i32
      %129 = tpu.memref_slice %arg5[%102, %128, %c0_i32_101] : memref<2x16x128xf32, #tpu.memory_space<any>> -> memref<1x1x128xf32, #tpu.memory_space<any>>
      %130 = tpu.memref_squeeze %129 : memref<1x1x128xf32, #tpu.memory_space<any>> -> memref<1x128xf32, #tpu.memory_space<any>>
      %c3_i32 = arith.constant 3 : i32
      %c0_i32_102 = arith.constant 0 : i32
      %131 = tpu.memref_slice %arg7[%c0_i32_98, %c0_i32_99, %c3_i32, %c0_i32_102] : memref<2x1x8x128xf32, #tpu.memory_space<vmem>> -> memref<1x1x1x128xf32, #tpu.memory_space<vmem>>
      %132 = tpu.memref_squeeze %131 : memref<1x1x1x128xf32, #tpu.memory_space<vmem>> -> memref<1x128xf32, #tpu.memory_space<vmem>>
      %133 = tpu.memref_slice %arg8[%c0_i32_100] : memref<2x!tpu.dma_semaphore, #tpu.memory_space<semaphore_mem>> -> memref<1x!tpu.dma_semaphore, #tpu.memory_space<semaphore_mem>>
      %134 = tpu.memref_squeeze %133 : memref<1x!tpu.dma_semaphore, #tpu.memory_space<semaphore_mem>> -> memref<!tpu.dma_semaphore, #tpu.memory_space<semaphore_mem>>
      tpu.enqueue_dma source(%130 : memref<1x128xf32, #tpu.memory_space<any>>) target(%132 : memref<1x128xf32, #tpu.memory_space<vmem>>) target_semaphore(%134 : memref<!tpu.dma_semaphore, #tpu.memory_space<semaphore_mem>>)
      %135 = arith.index_cast %102 : i32 to index
      %c4 = arith.constant 4 : index
      %136 = memref.load %arg1[%135, %c4] : memref<2x8xi32, #tpu.memory_space<smem>>
      %c0_i32_103 = arith.constant 0 : i32
      %c0_i32_104 = arith.constant 0 : i32
      %c0_i32_105 = arith.constant 0 : i32
      %c0_i32_106 = arith.constant 0 : i32
      %137 = tpu.memref_slice %arg5[%102, %136, %c0_i32_106] : memref<2x16x128xf32, #tpu.memory_space<any>> -> memref<1x1x128xf32, #tpu.memory_space<any>>
      %138 = tpu.memref_squeeze %137 : memref<1x1x128xf32, #tpu.memory_space<any>> -> memref<1x128xf32, #tpu.memory_space<any>>
      %c4_i32 = arith.constant 4 : i32
      %c0_i32_107 = arith.constant 0 : i32
      %139 = tpu.memref_slice %arg7[%c0_i32_103, %c0_i32_104, %c4_i32, %c0_i32_107] : memref<2x1x8x128xf32, #tpu.memory_space<vmem>> -> memref<1x1x1x128xf32, #tpu.memory_space<vmem>>
      %140 = tpu.memref_squeeze %139 : memref<1x1x1x128xf32, #tpu.memory_space<vmem>> -> memref<1x128xf32, #tpu.memory_space<vmem>>
      %141 = tpu.memref_slice %arg8[%c0_i32_105] : memref<2x!tpu.dma_semaphore, #tpu.memory_space<semaphore_mem>> -> memref<1x!tpu.dma_semaphore, #tpu.memory_space<semaphore_mem>>
      %142 = tpu.memref_squeeze %141 : memref<1x!tpu.dma_semaphore, #tpu.memory_space<semaphore_mem>> -> memref<!tpu.dma_semaphore, #tpu.memory_space<semaphore_mem>>
      tpu.enqueue_dma source(%138 : memref<1x128xf32, #tpu.memory_space<any>>) target(%140 : memref<1x128xf32, #tpu.memory_space<vmem>>) target_semaphore(%142 : memref<!tpu.dma_semaphore, #tpu.memory_space<semaphore_mem>>)
      %143 = arith.index_cast %102 : i32 to index
      %c5 = arith.constant 5 : index
      %144 = memref.load %arg1[%143, %c5] : memref<2x8xi32, #tpu.memory_space<smem>>
      %c0_i32_108 = arith.constant 0 : i32
      %c0_i32_109 = arith.constant 0 : i32
      %c0_i32_110 = arith.constant 0 : i32
      %c0_i32_111 = arith.constant 0 : i32
      %145 = tpu.memref_slice %arg5[%102, %144, %c0_i32_111] : memref<2x16x128xf32, #tpu.memory_space<any>> -> memref<1x1x128xf32, #tpu.memory_space<any>>
      %146 = tpu.memref_squeeze %145 : memref<1x1x128xf32, #tpu.memory_space<any>> -> memref<1x128xf32, #tpu.memory_space<any>>
      %c5_i32 = arith.constant 5 : i32
      %c0_i32_112 = arith.constant 0 : i32
      %147 = tpu.memref_slice %arg7[%c0_i32_108, %c0_i32_109, %c5_i32, %c0_i32_112] : memref<2x1x8x128xf32, #tpu.memory_space<vmem>> -> memref<1x1x1x128xf32, #tpu.memory_space<vmem>>
      %148 = tpu.memref_squeeze %147 : memref<1x1x1x128xf32, #tpu.memory_space<vmem>> -> memref<1x128xf32, #tpu.memory_space<vmem>>
      %149 = tpu.memref_slice %arg8[%c0_i32_110] : memref<2x!tpu.dma_semaphore, #tpu.memory_space<semaphore_mem>> -> memref<1x!tpu.dma_semaphore, #tpu.memory_space<semaphore_mem>>
      %150 = tpu.memref_squeeze %149 : memref<1x!tpu.dma_semaphore, #tpu.memory_space<semaphore_mem>> -> memref<!tpu.dma_semaphore, #tpu.memory_space<semaphore_mem>>
      tpu.enqueue_dma source(%146 : memref<1x128xf32, #tpu.memory_space<any>>) target(%148 : memref<1x128xf32, #tpu.memory_space<vmem>>) target_semaphore(%150 : memref<!tpu.dma_semaphore, #tpu.memory_space<semaphore_mem>>)
      %151 = arith.index_cast %102 : i32 to index
      %c6 = arith.constant 6 : index
      %152 = memref.load %arg1[%151, %c6] : memref<2x8xi32, #tpu.memory_space<smem>>
      %c0_i32_113 = arith.constant 0 : i32
      %c0_i32_114 = arith.constant 0 : i32
      %c0_i32_115 = arith.constant 0 : i32
      %c0_i32_116 = arith.constant 0 : i32
      %153 = tpu.memref_slice %arg5[%102, %152, %c0_i32_116] : memref<2x16x128xf32, #tpu.memory_space<any>> -> memref<1x1x128xf32, #tpu.memory_space<any>>
      %154 = tpu.memref_squeeze %153 : memref<1x1x128xf32, #tpu.memory_space<any>> -> memref<1x128xf32, #tpu.memory_space<any>>
      %c6_i32 = arith.constant 6 : i32
      %c0_i32_117 = arith.constant 0 : i32
      %155 = tpu.memref_slice %arg7[%c0_i32_113, %c0_i32_114, %c6_i32, %c0_i32_117] : memref<2x1x8x128xf32, #tpu.memory_space<vmem>> -> memref<1x1x1x128xf32, #tpu.memory_space<vmem>>
      %156 = tpu.memref_squeeze %155 : memref<1x1x1x128xf32, #tpu.memory_space<vmem>> -> memref<1x128xf32, #tpu.memory_space<vmem>>
      %157 = tpu.memref_slice %arg8[%c0_i32_115] : memref<2x!tpu.dma_semaphore, #tpu.memory_space<semaphore_mem>> -> memref<1x!tpu.dma_semaphore, #tpu.memory_space<semaphore_mem>>
      %158 = tpu.memref_squeeze %157 : memref<1x!tpu.dma_semaphore, #tpu.memory_space<semaphore_mem>> -> memref<!tpu.dma_semaphore, #tpu.memory_space<semaphore_mem>>
      tpu.enqueue_dma source(%154 : memref<1x128xf32, #tpu.memory_space<any>>) target(%156 : memref<1x128xf32, #tpu.memory_space<vmem>>) target_semaphore(%158 : memref<!tpu.dma_semaphore, #tpu.memory_space<semaphore_mem>>)
      %159 = arith.index_cast %102 : i32 to index
      %c7 = arith.constant 7 : index
      %160 = memref.load %arg1[%159, %c7] : memref<2x8xi32, #tpu.memory_space<smem>>
      %c0_i32_118 = arith.constant 0 : i32
      %c0_i32_119 = arith.constant 0 : i32
      %c0_i32_120 = arith.constant 0 : i32
      %c0_i32_121 = arith.constant 0 : i32
      %161 = tpu.memref_slice %arg5[%102, %160, %c0_i32_121] : memref<2x16x128xf32, #tpu.memory_space<any>> -> memref<1x1x128xf32, #tpu.memory_space<any>>
      %162 = tpu.memref_squeeze %161 : memref<1x1x128xf32, #tpu.memory_space<any>> -> memref<1x128xf32, #tpu.memory_space<any>>
      %c7_i32 = arith.constant 7 : i32
      %c0_i32_122 = arith.constant 0 : i32
      %163 = tpu.memref_slice %arg7[%c0_i32_118, %c0_i32_119, %c7_i32, %c0_i32_122] : memref<2x1x8x128xf32, #tpu.memory_space<vmem>> -> memref<1x1x1x128xf32, #tpu.memory_space<vmem>>
      %164 = tpu.memref_squeeze %163 : memref<1x1x1x128xf32, #tpu.memory_space<vmem>> -> memref<1x128xf32, #tpu.memory_space<vmem>>
      %165 = tpu.memref_slice %arg8[%c0_i32_120] : memref<2x!tpu.dma_semaphore, #tpu.memory_space<semaphore_mem>> -> memref<1x!tpu.dma_semaphore, #tpu.memory_space<semaphore_mem>>
      %166 = tpu.memref_squeeze %165 : memref<1x!tpu.dma_semaphore, #tpu.memory_space<semaphore_mem>> -> memref<!tpu.dma_semaphore, #tpu.memory_space<semaphore_mem>>
      tpu.enqueue_dma source(%162 : memref<1x128xf32, #tpu.memory_space<any>>) target(%164 : memref<1x128xf32, #tpu.memory_space<vmem>>) target_semaphore(%166 : memref<!tpu.dma_semaphore, #tpu.memory_space<semaphore_mem>>)
    } else {
    }
    %c2_i32 = arith.constant 2 : i32
    %c0_i32_1 = arith.constant 0 : i32
    %3 = arith.cmpi eq, %c2_i32, %c0_i32_1 : i32
    %c1_i32 = arith.constant 1 : i32
    %4 = arith.select %3, %c1_i32, %c2_i32 : i32
    %5 = arith.remsi %arg0, %4 : i32
    %c0_i32_2 = arith.constant 0 : i32
    %6 = arith.cmpi ne, %5, %c0_i32_2 : i32
    %c0_i32_3 = arith.constant 0 : i32
    %7 = arith.cmpi slt, %5, %c0_i32_3 : i32
    %c0_i32_4 = arith.constant 0 : i32
    %8 = arith.cmpi slt, %4, %c0_i32_4 : i32
    %9 = arith.xori %7, %8 : i1
    %10 = arith.andi %9, %6 : i1
    %11 = arith.addi %5, %4 : i32
    %12 = arith.select %10, %11, %5 : i32
    %c1_i32_5 = arith.constant 1 : i32
    %13 = arith.addi %arg0, %c1_i32_5 : i32
    %c2_i32_6 = arith.constant 2 : i32
    %c0_i32_7 = arith.constant 0 : i32
    %14 = arith.cmpi eq, %c2_i32_6, %c0_i32_7 : i32
    %c1_i32_8 = arith.constant 1 : i32
    %15 = arith.select %14, %c1_i32_8, %c2_i32_6 : i32
    %16 = arith.remsi %13, %15 : i32
    %c0_i32_9 = arith.constant 0 : i32
    %17 = arith.cmpi ne, %16, %c0_i32_9 : i32
    %c0_i32_10 = arith.constant 0 : i32
    %18 = arith.cmpi slt, %16, %c0_i32_10 : i32
    %c0_i32_11 = arith.constant 0 : i32
    %19 = arith.cmpi slt, %15, %c0_i32_11 : i32
    %20 = arith.xori %18, %19 : i1
    %21 = arith.andi %20, %17 : i1
    %22 = arith.addi %16, %15 : i32
    %23 = arith.select %21, %22, %16 : i32
    %c1_i32_12 = arith.constant 1 : i32
    %24 = arith.addi %arg0, %c1_i32_12 : i32
    %c2_i32_13 = arith.constant 2 : i32
    %25 = arith.cmpi slt, %24, %c2_i32_13 : i32
    %26 = arith.extui %25 : i1 to i32
    %c0_i32_14 = arith.constant 0 : i32
    %27 = arith.cmpi ne, %26, %c0_i32_14 : i32
    scf.if %27 {
      %c1_i32_77 = arith.constant 1 : i32
      %102 = arith.addi %arg0, %c1_i32_77 : i32
      %c1_i32_78 = arith.constant 1 : i32
      %103 = arith.muli %102, %c1_i32_78 : i32
      %c0_i32_79 = arith.constant 0 : i32
      %104 = arith.addi %103, %c0_i32_79 : i32
      %c1_i32_80 = arith.constant 1 : i32
      %105 = arith.minsi %104, %c1_i32_80 : i32
      %106 = arith.index_cast %105 : i32 to index
      %c0_81 = arith.constant 0 : index
      %107 = memref.load %arg1[%106, %c0_81] : memref<2x8xi32, #tpu.memory_space<smem>>
      %c0_i32_82 = arith.constant 0 : i32
      %c0_i32_83 = arith.constant 0 : i32
      %108 = tpu.memref_slice %arg5[%105, %107, %c0_i32_83] : memref<2x16x128xf32, #tpu.memory_space<any>> -> memref<1x1x128xf32, #tpu.memory_space<any>>
      %109 = tpu.memref_squeeze %108 : memref<1x1x128xf32, #tpu.memory_space<any>> -> memref<1x128xf32, #tpu.memory_space<any>>
      %c0_i32_84 = arith.constant 0 : i32
      %c0_i32_85 = arith.constant 0 : i32
      %110 = tpu.memref_slice %arg7[%23, %c0_i32_82, %c0_i32_84, %c0_i32_85] : memref<2x1x8x128xf32, #tpu.memory_space<vmem>> -> memref<1x1x1x128xf32, #tpu.memory_space<vmem>>
      %111 = tpu.memref_squeeze %110 : memref<1x1x1x128xf32, #tpu.memory_space<vmem>> -> memref<1x128xf32, #tpu.memory_space<vmem>>
      %112 = tpu.memref_slice %arg8[%23] : memref<2x!tpu.dma_semaphore, #tpu.memory_space<semaphore_mem>> -> memref<1x!tpu.dma_semaphore, #tpu.memory_space<semaphore_mem>>
      %113 = tpu.memref_squeeze %112 : memref<1x!tpu.dma_semaphore, #tpu.memory_space<semaphore_mem>> -> memref<!tpu.dma_semaphore, #tpu.memory_space<semaphore_mem>>
      tpu.enqueue_dma source(%109 : memref<1x128xf32, #tpu.memory_space<any>>) target(%111 : memref<1x128xf32, #tpu.memory_space<vmem>>) target_semaphore(%113 : memref<!tpu.dma_semaphore, #tpu.memory_space<semaphore_mem>>)
      %114 = arith.index_cast %105 : i32 to index
      %c1 = arith.constant 1 : index
      %115 = memref.load %arg1[%114, %c1] : memref<2x8xi32, #tpu.memory_space<smem>>
      %c0_i32_86 = arith.constant 0 : i32
      %c0_i32_87 = arith.constant 0 : i32
      %116 = tpu.memref_slice %arg5[%105, %115, %c0_i32_87] : memref<2x16x128xf32, #tpu.memory_space<any>> -> memref<1x1x128xf32, #tpu.memory_space<any>>
      %117 = tpu.memref_squeeze %116 : memref<1x1x128xf32, #tpu.memory_space<any>> -> memref<1x128xf32, #tpu.memory_space<any>>
      %c1_i32_88 = arith.constant 1 : i32
      %c0_i32_89 = arith.constant 0 : i32
      %118 = tpu.memref_slice %arg7[%23, %c0_i32_86, %c1_i32_88, %c0_i32_89] : memref<2x1x8x128xf32, #tpu.memory_space<vmem>> -> memref<1x1x1x128xf32, #tpu.memory_space<vmem>>
      %119 = tpu.memref_squeeze %118 : memref<1x1x1x128xf32, #tpu.memory_space<vmem>> -> memref<1x128xf32, #tpu.memory_space<vmem>>
      %120 = tpu.memref_slice %arg8[%23] : memref<2x!tpu.dma_semaphore, #tpu.memory_space<semaphore_mem>> -> memref<1x!tpu.dma_semaphore, #tpu.memory_space<semaphore_mem>>
      %121 = tpu.memref_squeeze %120 : memref<1x!tpu.dma_semaphore, #tpu.memory_space<semaphore_mem>> -> memref<!tpu.dma_semaphore, #tpu.memory_space<semaphore_mem>>
      tpu.enqueue_dma source(%117 : memref<1x128xf32, #tpu.memory_space<any>>) target(%119 : memref<1x128xf32, #tpu.memory_space<vmem>>) target_semaphore(%121 : memref<!tpu.dma_semaphore, #tpu.memory_space<semaphore_mem>>)
      %122 = arith.index_cast %105 : i32 to index
      %c2 = arith.constant 2 : index
      %123 = memref.load %arg1[%122, %c2] : memref<2x8xi32, #tpu.memory_space<smem>>
      %c0_i32_90 = arith.constant 0 : i32
      %c0_i32_91 = arith.constant 0 : i32
      %124 = tpu.memref_slice %arg5[%105, %123, %c0_i32_91] : memref<2x16x128xf32, #tpu.memory_space<any>> -> memref<1x1x128xf32, #tpu.memory_space<any>>
      %125 = tpu.memref_squeeze %124 : memref<1x1x128xf32, #tpu.memory_space<any>> -> memref<1x128xf32, #tpu.memory_space<any>>
      %c2_i32_92 = arith.constant 2 : i32
      %c0_i32_93 = arith.constant 0 : i32
      %126 = tpu.memref_slice %arg7[%23, %c0_i32_90, %c2_i32_92, %c0_i32_93] : memref<2x1x8x128xf32, #tpu.memory_space<vmem>> -> memref<1x1x1x128xf32, #tpu.memory_space<vmem>>
      %127 = tpu.memref_squeeze %126 : memref<1x1x1x128xf32, #tpu.memory_space<vmem>> -> memref<1x128xf32, #tpu.memory_space<vmem>>
      %128 = tpu.memref_slice %arg8[%23] : memref<2x!tpu.dma_semaphore, #tpu.memory_space<semaphore_mem>> -> memref<1x!tpu.dma_semaphore, #tpu.memory_space<semaphore_mem>>
      %129 = tpu.memref_squeeze %128 : memref<1x!tpu.dma_semaphore, #tpu.memory_space<semaphore_mem>> -> memref<!tpu.dma_semaphore, #tpu.memory_space<semaphore_mem>>
      tpu.enqueue_dma source(%125 : memref<1x128xf32, #tpu.memory_space<any>>) target(%127 : memref<1x128xf32, #tpu.memory_space<vmem>>) target_semaphore(%129 : memref<!tpu.dma_semaphore, #tpu.memory_space<semaphore_mem>>)
      %130 = arith.index_cast %105 : i32 to index
      %c3 = arith.constant 3 : index
      %131 = memref.load %arg1[%130, %c3] : memref<2x8xi32, #tpu.memory_space<smem>>
      %c0_i32_94 = arith.constant 0 : i32
      %c0_i32_95 = arith.constant 0 : i32
      %132 = tpu.memref_slice %arg5[%105, %131, %c0_i32_95] : memref<2x16x128xf32, #tpu.memory_space<any>> -> memref<1x1x128xf32, #tpu.memory_space<any>>
      %133 = tpu.memref_squeeze %132 : memref<1x1x128xf32, #tpu.memory_space<any>> -> memref<1x128xf32, #tpu.memory_space<any>>
      %c3_i32 = arith.constant 3 : i32
      %c0_i32_96 = arith.constant 0 : i32
      %134 = tpu.memref_slice %arg7[%23, %c0_i32_94, %c3_i32, %c0_i32_96] : memref<2x1x8x128xf32, #tpu.memory_space<vmem>> -> memref<1x1x1x128xf32, #tpu.memory_space<vmem>>
      %135 = tpu.memref_squeeze %134 : memref<1x1x1x128xf32, #tpu.memory_space<vmem>> -> memref<1x128xf32, #tpu.memory_space<vmem>>
      %136 = tpu.memref_slice %arg8[%23] : memref<2x!tpu.dma_semaphore, #tpu.memory_space<semaphore_mem>> -> memref<1x!tpu.dma_semaphore, #tpu.memory_space<semaphore_mem>>
      %137 = tpu.memref_squeeze %136 : memref<1x!tpu.dma_semaphore, #tpu.memory_space<semaphore_mem>> -> memref<!tpu.dma_semaphore, #tpu.memory_space<semaphore_mem>>
      tpu.enqueue_dma source(%133 : memref<1x128xf32, #tpu.memory_space<any>>) target(%135 : memref<1x128xf32, #tpu.memory_space<vmem>>) target_semaphore(%137 : memref<!tpu.dma_semaphore, #tpu.memory_space<semaphore_mem>>)
      %138 = arith.index_cast %105 : i32 to index
      %c4 = arith.constant 4 : index
      %139 = memref.load %arg1[%138, %c4] : memref<2x8xi32, #tpu.memory_space<smem>>
      %c0_i32_97 = arith.constant 0 : i32
      %c0_i32_98 = arith.constant 0 : i32
      %140 = tpu.memref_slice %arg5[%105, %139, %c0_i32_98] : memref<2x16x128xf32, #tpu.memory_space<any>> -> memref<1x1x128xf32, #tpu.memory_space<any>>
      %141 = tpu.memref_squeeze %140 : memref<1x1x128xf32, #tpu.memory_space<any>> -> memref<1x128xf32, #tpu.memory_space<any>>
      %c4_i32 = arith.constant 4 : i32
      %c0_i32_99 = arith.constant 0 : i32
      %142 = tpu.memref_slice %arg7[%23, %c0_i32_97, %c4_i32, %c0_i32_99] : memref<2x1x8x128xf32, #tpu.memory_space<vmem>> -> memref<1x1x1x128xf32, #tpu.memory_space<vmem>>
      %143 = tpu.memref_squeeze %142 : memref<1x1x1x128xf32, #tpu.memory_space<vmem>> -> memref<1x128xf32, #tpu.memory_space<vmem>>
      %144 = tpu.memref_slice %arg8[%23] : memref<2x!tpu.dma_semaphore, #tpu.memory_space<semaphore_mem>> -> memref<1x!tpu.dma_semaphore, #tpu.memory_space<semaphore_mem>>
      %145 = tpu.memref_squeeze %144 : memref<1x!tpu.dma_semaphore, #tpu.memory_space<semaphore_mem>> -> memref<!tpu.dma_semaphore, #tpu.memory_space<semaphore_mem>>
      tpu.enqueue_dma source(%141 : memref<1x128xf32, #tpu.memory_space<any>>) target(%143 : memref<1x128xf32, #tpu.memory_space<vmem>>) target_semaphore(%145 : memref<!tpu.dma_semaphore, #tpu.memory_space<semaphore_mem>>)
      %146 = arith.index_cast %105 : i32 to index
      %c5 = arith.constant 5 : index
      %147 = memref.load %arg1[%146, %c5] : memref<2x8xi32, #tpu.memory_space<smem>>
      %c0_i32_100 = arith.constant 0 : i32
      %c0_i32_101 = arith.constant 0 : i32
      %148 = tpu.memref_slice %arg5[%105, %147, %c0_i32_101] : memref<2x16x128xf32, #tpu.memory_space<any>> -> memref<1x1x128xf32, #tpu.memory_space<any>>
      %149 = tpu.memref_squeeze %148 : memref<1x1x128xf32, #tpu.memory_space<any>> -> memref<1x128xf32, #tpu.memory_space<any>>
      %c5_i32 = arith.constant 5 : i32
      %c0_i32_102 = arith.constant 0 : i32
      %150 = tpu.memref_slice %arg7[%23, %c0_i32_100, %c5_i32, %c0_i32_102] : memref<2x1x8x128xf32, #tpu.memory_space<vmem>> -> memref<1x1x1x128xf32, #tpu.memory_space<vmem>>
      %151 = tpu.memref_squeeze %150 : memref<1x1x1x128xf32, #tpu.memory_space<vmem>> -> memref<1x128xf32, #tpu.memory_space<vmem>>
      %152 = tpu.memref_slice %arg8[%23] : memref<2x!tpu.dma_semaphore, #tpu.memory_space<semaphore_mem>> -> memref<1x!tpu.dma_semaphore, #tpu.memory_space<semaphore_mem>>
      %153 = tpu.memref_squeeze %152 : memref<1x!tpu.dma_semaphore, #tpu.memory_space<semaphore_mem>> -> memref<!tpu.dma_semaphore, #tpu.memory_space<semaphore_mem>>
      tpu.enqueue_dma source(%149 : memref<1x128xf32, #tpu.memory_space<any>>) target(%151 : memref<1x128xf32, #tpu.memory_space<vmem>>) target_semaphore(%153 : memref<!tpu.dma_semaphore, #tpu.memory_space<semaphore_mem>>)
      %154 = arith.index_cast %105 : i32 to index
      %c6 = arith.constant 6 : index
      %155 = memref.load %arg1[%154, %c6] : memref<2x8xi32, #tpu.memory_space<smem>>
      %c0_i32_103 = arith.constant 0 : i32
      %c0_i32_104 = arith.constant 0 : i32
      %156 = tpu.memref_slice %arg5[%105, %155, %c0_i32_104] : memref<2x16x128xf32, #tpu.memory_space<any>> -> memref<1x1x128xf32, #tpu.memory_space<any>>
      %157 = tpu.memref_squeeze %156 : memref<1x1x128xf32, #tpu.memory_space<any>> -> memref<1x128xf32, #tpu.memory_space<any>>
      %c6_i32 = arith.constant 6 : i32
      %c0_i32_105 = arith.constant 0 : i32
      %158 = tpu.memref_slice %arg7[%23, %c0_i32_103, %c6_i32, %c0_i32_105] : memref<2x1x8x128xf32, #tpu.memory_space<vmem>> -> memref<1x1x1x128xf32, #tpu.memory_space<vmem>>
      %159 = tpu.memref_squeeze %158 : memref<1x1x1x128xf32, #tpu.memory_space<vmem>> -> memref<1x128xf32, #tpu.memory_space<vmem>>
      %160 = tpu.memref_slice %arg8[%23] : memref<2x!tpu.dma_semaphore, #tpu.memory_space<semaphore_mem>> -> memref<1x!tpu.dma_semaphore, #tpu.memory_space<semaphore_mem>>
      %161 = tpu.memref_squeeze %160 : memref<1x!tpu.dma_semaphore, #tpu.memory_space<semaphore_mem>> -> memref<!tpu.dma_semaphore, #tpu.memory_space<semaphore_mem>>
      tpu.enqueue_dma source(%157 : memref<1x128xf32, #tpu.memory_space<any>>) target(%159 : memref<1x128xf32, #tpu.memory_space<vmem>>) target_semaphore(%161 : memref<!tpu.dma_semaphore, #tpu.memory_space<semaphore_mem>>)
      %162 = arith.index_cast %105 : i32 to index
      %c7 = arith.constant 7 : index
      %163 = memref.load %arg1[%162, %c7] : memref<2x8xi32, #tpu.memory_space<smem>>
      %c0_i32_106 = arith.constant 0 : i32
      %c0_i32_107 = arith.constant 0 : i32
      %164 = tpu.memref_slice %arg5[%105, %163, %c0_i32_107] : memref<2x16x128xf32, #tpu.memory_space<any>> -> memref<1x1x128xf32, #tpu.memory_space<any>>
      %165 = tpu.memref_squeeze %164 : memref<1x1x128xf32, #tpu.memory_space<any>> -> memref<1x128xf32, #tpu.memory_space<any>>
      %c7_i32 = arith.constant 7 : i32
      %c0_i32_108 = arith.constant 0 : i32
      %166 = tpu.memref_slice %arg7[%23, %c0_i32_106, %c7_i32, %c0_i32_108] : memref<2x1x8x128xf32, #tpu.memory_space<vmem>> -> memref<1x1x1x128xf32, #tpu.memory_space<vmem>>
      %167 = tpu.memref_squeeze %166 : memref<1x1x1x128xf32, #tpu.memory_space<vmem>> -> memref<1x128xf32, #tpu.memory_space<vmem>>
      %168 = tpu.memref_slice %arg8[%23] : memref<2x!tpu.dma_semaphore, #tpu.memory_space<semaphore_mem>> -> memref<1x!tpu.dma_semaphore, #tpu.memory_space<semaphore_mem>>
      %169 = tpu.memref_squeeze %168 : memref<1x!tpu.dma_semaphore, #tpu.memory_space<semaphore_mem>> -> memref<!tpu.dma_semaphore, #tpu.memory_space<semaphore_mem>>
      tpu.enqueue_dma source(%165 : memref<1x128xf32, #tpu.memory_space<any>>) target(%167 : memref<1x128xf32, #tpu.memory_space<vmem>>) target_semaphore(%169 : memref<!tpu.dma_semaphore, #tpu.memory_space<semaphore_mem>>)
    } else {
    }
    %c0_i32_15 = arith.constant 0 : i32
    %c0_i32_16 = arith.constant 0 : i32
    %c0_i32_17 = arith.constant 0 : i32
    %c0_i32_18 = arith.constant 0 : i32
    %28 = tpu.memref_slice %arg5[%c0_i32_15, %c0_i32_17, %c0_i32_18] : memref<2x16x128xf32, #tpu.memory_space<any>> -> memref<1x1x128xf32, #tpu.memory_space<any>>
    %29 = tpu.memref_squeeze %28 : memref<1x1x128xf32, #tpu.memory_space<any>> -> memref<1x128xf32, #tpu.memory_space<any>>
    %c0_i32_19 = arith.constant 0 : i32
    %c0_i32_20 = arith.constant 0 : i32
    %30 = tpu.memref_slice %arg7[%12, %c0_i32_16, %c0_i32_19, %c0_i32_20] : memref<2x1x8x128xf32, #tpu.memory_space<vmem>> -> memref<1x1x1x128xf32, #tpu.memory_space<vmem>>
    %31 = tpu.memref_squeeze %30 : memref<1x1x1x128xf32, #tpu.memory_space<vmem>> -> memref<1x128xf32, #tpu.memory_space<vmem>>
    %32 = tpu.memref_slice %arg8[%12] : memref<2x!tpu.dma_semaphore, #tpu.memory_space<semaphore_mem>> -> memref<1x!tpu.dma_semaphore, #tpu.memory_space<semaphore_mem>>
    %33 = tpu.memref_squeeze %32 : memref<1x!tpu.dma_semaphore, #tpu.memory_space<semaphore_mem>> -> memref<!tpu.dma_semaphore, #tpu.memory_space<semaphore_mem>>
    tpu.wait_dma2 semaphore(%33 : memref<!tpu.dma_semaphore, #tpu.memory_space<semaphore_mem>>) src(%29 : memref<1x128xf32, #tpu.memory_space<any>>) dst(%31 : memref<1x128xf32, #tpu.memory_space<vmem>>)
    %c0_i32_21 = arith.constant 0 : i32
    %c0_i32_22 = arith.constant 0 : i32
    %c0_i32_23 = arith.constant 0 : i32
    %c0_i32_24 = arith.constant 0 : i32
    %34 = tpu.memref_slice %arg5[%c0_i32_21, %c0_i32_23, %c0_i32_24] : memref<2x16x128xf32, #tpu.memory_space<any>> -> memref<1x1x128xf32, #tpu.memory_space<any>>
    %35 = tpu.memref_squeeze %34 : memref<1x1x128xf32, #tpu.memory_space<any>> -> memref<1x128xf32, #tpu.memory_space<any>>
    %c0_i32_25 = arith.constant 0 : i32
    %c0_i32_26 = arith.constant 0 : i32
    %36 = tpu.memref_slice %arg7[%12, %c0_i32_22, %c0_i32_25, %c0_i32_26] : memref<2x1x8x128xf32, #tpu.memory_space<vmem>> -> memref<1x1x1x128xf32, #tpu.memory_space<vmem>>
    %37 = tpu.memref_squeeze %36 : memref<1x1x1x128xf32, #tpu.memory_space<vmem>> -> memref<1x128xf32, #tpu.memory_space<vmem>>
    %38 = tpu.memref_slice %arg8[%12] : memref<2x!tpu.dma_semaphore, #tpu.memory_space<semaphore_mem>> -> memref<1x!tpu.dma_semaphore, #tpu.memory_space<semaphore_mem>>
    %39 = tpu.memref_squeeze %38 : memref<1x!tpu.dma_semaphore, #tpu.memory_space<semaphore_mem>> -> memref<!tpu.dma_semaphore, #tpu.memory_space<semaphore_mem>>
    tpu.wait_dma2 semaphore(%39 : memref<!tpu.dma_semaphore, #tpu.memory_space<semaphore_mem>>) src(%35 : memref<1x128xf32, #tpu.memory_space<any>>) dst(%37 : memref<1x128xf32, #tpu.memory_space<vmem>>)
    %c0_i32_27 = arith.constant 0 : i32
    %c0_i32_28 = arith.constant 0 : i32
    %c0_i32_29 = arith.constant 0 : i32
    %c0_i32_30 = arith.constant 0 : i32
    %40 = tpu.memref_slice %arg5[%c0_i32_27, %c0_i32_29, %c0_i32_30] : memref<2x16x128xf32, #tpu.memory_space<any>> -> memref<1x1x128xf32, #tpu.memory_space<any>>
    %41 = tpu.memref_squeeze %40 : memref<1x1x128xf32, #tpu.memory_space<any>> -> memref<1x128xf32, #tpu.memory_space<any>>
    %c0_i32_31 = arith.constant 0 : i32
    %c0_i32_32 = arith.constant 0 : i32
    %42 = tpu.memref_slice %arg7[%12, %c0_i32_28, %c0_i32_31, %c0_i32_32] : memref<2x1x8x128xf32, #tpu.memory_space<vmem>> -> memref<1x1x1x128xf32, #tpu.memory_space<vmem>>
    %43 = tpu.memref_squeeze %42 : memref<1x1x1x128xf32, #tpu.memory_space<vmem>> -> memref<1x128xf32, #tpu.memory_space<vmem>>
    %44 = tpu.memref_slice %arg8[%12] : memref<2x!tpu.dma_semaphore, #tpu.memory_space<semaphore_mem>> -> memref<1x!tpu.dma_semaphore, #tpu.memory_space<semaphore_mem>>
    %45 = tpu.memref_squeeze %44 : memref<1x!tpu.dma_semaphore, #tpu.memory_space<semaphore_mem>> -> memref<!tpu.dma_semaphore, #tpu.memory_space<semaphore_mem>>
    tpu.wait_dma2 semaphore(%45 : memref<!tpu.dma_semaphore, #tpu.memory_space<semaphore_mem>>) src(%41 : memref<1x128xf32, #tpu.memory_space<any>>) dst(%43 : memref<1x128xf32, #tpu.memory_space<vmem>>)
    %c0_i32_33 = arith.constant 0 : i32
    %c0_i32_34 = arith.constant 0 : i32
    %c0_i32_35 = arith.constant 0 : i32
    %c0_i32_36 = arith.constant 0 : i32
    %46 = tpu.memref_slice %arg5[%c0_i32_33, %c0_i32_35, %c0_i32_36] : memref<2x16x128xf32, #tpu.memory_space<any>> -> memref<1x1x128xf32, #tpu.memory_space<any>>
    %47 = tpu.memref_squeeze %46 : memref<1x1x128xf32, #tpu.memory_space<any>> -> memref<1x128xf32, #tpu.memory_space<any>>
    %c0_i32_37 = arith.constant 0 : i32
    %c0_i32_38 = arith.constant 0 : i32
    %48 = tpu.memref_slice %arg7[%12, %c0_i32_34, %c0_i32_37, %c0_i32_38] : memref<2x1x8x128xf32, #tpu.memory_space<vmem>> -> memref<1x1x1x128xf32, #tpu.memory_space<vmem>>
    %49 = tpu.memref_squeeze %48 : memref<1x1x1x128xf32, #tpu.memory_space<vmem>> -> memref<1x128xf32, #tpu.memory_space<vmem>>
    %50 = tpu.memref_slice %arg8[%12] : memref<2x!tpu.dma_semaphore, #tpu.memory_space<semaphore_mem>> -> memref<1x!tpu.dma_semaphore, #tpu.memory_space<semaphore_mem>>
    %51 = tpu.memref_squeeze %50 : memref<1x!tpu.dma_semaphore, #tpu.memory_space<semaphore_mem>> -> memref<!tpu.dma_semaphore, #tpu.memory_space<semaphore_mem>>
    tpu.wait_dma2 semaphore(%51 : memref<!tpu.dma_semaphore, #tpu.memory_space<semaphore_mem>>) src(%47 : memref<1x128xf32, #tpu.memory_space<any>>) dst(%49 : memref<1x128xf32, #tpu.memory_space<vmem>>)
    %c0_i32_39 = arith.constant 0 : i32
    %c0_i32_40 = arith.constant 0 : i32
    %c0_i32_41 = arith.constant 0 : i32
    %c0_i32_42 = arith.constant 0 : i32
    %52 = tpu.memref_slice %arg5[%c0_i32_39, %c0_i32_41, %c0_i32_42] : memref<2x16x128xf32, #tpu.memory_space<any>> -> memref<1x1x128xf32, #tpu.memory_space<any>>
    %53 = tpu.memref_squeeze %52 : memref<1x1x128xf32, #tpu.memory_space<any>> -> memref<1x128xf32, #tpu.memory_space<any>>
    %c0_i32_43 = arith.constant 0 : i32
    %c0_i32_44 = arith.constant 0 : i32
    %54 = tpu.memref_slice %arg7[%12, %c0_i32_40, %c0_i32_43, %c0_i32_44] : memref<2x1x8x128xf32, #tpu.memory_space<vmem>> -> memref<1x1x1x128xf32, #tpu.memory_space<vmem>>
    %55 = tpu.memref_squeeze %54 : memref<1x1x1x128xf32, #tpu.memory_space<vmem>> -> memref<1x128xf32, #tpu.memory_space<vmem>>
    %56 = tpu.memref_slice %arg8[%12] : memref<2x!tpu.dma_semaphore, #tpu.memory_space<semaphore_mem>> -> memref<1x!tpu.dma_semaphore, #tpu.memory_space<semaphore_mem>>
    %57 = tpu.memref_squeeze %56 : memref<1x!tpu.dma_semaphore, #tpu.memory_space<semaphore_mem>> -> memref<!tpu.dma_semaphore, #tpu.memory_space<semaphore_mem>>
    tpu.wait_dma2 semaphore(%57 : memref<!tpu.dma_semaphore, #tpu.memory_space<semaphore_mem>>) src(%53 : memref<1x128xf32, #tpu.memory_space<any>>) dst(%55 : memref<1x128xf32, #tpu.memory_space<vmem>>)
    %c0_i32_45 = arith.constant 0 : i32
    %c0_i32_46 = arith.constant 0 : i32
    %c0_i32_47 = arith.constant 0 : i32
    %c0_i32_48 = arith.constant 0 : i32
    %58 = tpu.memref_slice %arg5[%c0_i32_45, %c0_i32_47, %c0_i32_48] : memref<2x16x128xf32, #tpu.memory_space<any>> -> memref<1x1x128xf32, #tpu.memory_space<any>>
    %59 = tpu.memref_squeeze %58 : memref<1x1x128xf32, #tpu.memory_space<any>> -> memref<1x128xf32, #tpu.memory_space<any>>
    %c0_i32_49 = arith.constant 0 : i32
    %c0_i32_50 = arith.constant 0 : i32
    %60 = tpu.memref_slice %arg7[%12, %c0_i32_46, %c0_i32_49, %c0_i32_50] : memref<2x1x8x128xf32, #tpu.memory_space<vmem>> -> memref<1x1x1x128xf32, #tpu.memory_space<vmem>>
    %61 = tpu.memref_squeeze %60 : memref<1x1x1x128xf32, #tpu.memory_space<vmem>> -> memref<1x128xf32, #tpu.memory_space<vmem>>
    %62 = tpu.memref_slice %arg8[%12] : memref<2x!tpu.dma_semaphore, #tpu.memory_space<semaphore_mem>> -> memref<1x!tpu.dma_semaphore, #tpu.memory_space<semaphore_mem>>
    %63 = tpu.memref_squeeze %62 : memref<1x!tpu.dma_semaphore, #tpu.memory_space<semaphore_mem>> -> memref<!tpu.dma_semaphore, #tpu.memory_space<semaphore_mem>>
    tpu.wait_dma2 semaphore(%63 : memref<!tpu.dma_semaphore, #tpu.memory_space<semaphore_mem>>) src(%59 : memref<1x128xf32, #tpu.memory_space<any>>) dst(%61 : memref<1x128xf32, #tpu.memory_space<vmem>>)
    %c0_i32_51 = arith.constant 0 : i32
    %c0_i32_52 = arith.constant 0 : i32
    %c0_i32_53 = arith.constant 0 : i32
    %c0_i32_54 = arith.constant 0 : i32
    %64 = tpu.memref_slice %arg5[%c0_i32_51, %c0_i32_53, %c0_i32_54] : memref<2x16x128xf32, #tpu.memory_space<any>> -> memref<1x1x128xf32, #tpu.memory_space<any>>
    %65 = tpu.memref_squeeze %64 : memref<1x1x128xf32, #tpu.memory_space<any>> -> memref<1x128xf32, #tpu.memory_space<any>>
    %c0_i32_55 = arith.constant 0 : i32
    %c0_i32_56 = arith.constant 0 : i32
    %66 = tpu.memref_slice %arg7[%12, %c0_i32_52, %c0_i32_55, %c0_i32_56] : memref<2x1x8x128xf32, #tpu.memory_space<vmem>> -> memref<1x1x1x128xf32, #tpu.memory_space<vmem>>
    %67 = tpu.memref_squeeze %66 : memref<1x1x1x128xf32, #tpu.memory_space<vmem>> -> memref<1x128xf32, #tpu.memory_space<vmem>>
    %68 = tpu.memref_slice %arg8[%12] : memref<2x!tpu.dma_semaphore, #tpu.memory_space<semaphore_mem>> -> memref<1x!tpu.dma_semaphore, #tpu.memory_space<semaphore_mem>>
    %69 = tpu.memref_squeeze %68 : memref<1x!tpu.dma_semaphore, #tpu.memory_space<semaphore_mem>> -> memref<!tpu.dma_semaphore, #tpu.memory_space<semaphore_mem>>
    tpu.wait_dma2 semaphore(%69 : memref<!tpu.dma_semaphore, #tpu.memory_space<semaphore_mem>>) src(%65 : memref<1x128xf32, #tpu.memory_space<any>>) dst(%67 : memref<1x128xf32, #tpu.memory_space<vmem>>)
    %c0_i32_57 = arith.constant 0 : i32
    %c0_i32_58 = arith.constant 0 : i32
    %c0_i32_59 = arith.constant 0 : i32
    %c0_i32_60 = arith.constant 0 : i32
    %70 = tpu.memref_slice %arg5[%c0_i32_57, %c0_i32_59, %c0_i32_60] : memref<2x16x128xf32, #tpu.memory_space<any>> -> memref<1x1x128xf32, #tpu.memory_space<any>>
    %71 = tpu.memref_squeeze %70 : memref<1x1x128xf32, #tpu.memory_space<any>> -> memref<1x128xf32, #tpu.memory_space<any>>
    %c0_i32_61 = arith.constant 0 : i32
    %c0_i32_62 = arith.constant 0 : i32
    %72 = tpu.memref_slice %arg7[%12, %c0_i32_58, %c0_i32_61, %c0_i32_62] : memref<2x1x8x128xf32, #tpu.memory_space<vmem>> -> memref<1x1x1x128xf32, #tpu.memory_space<vmem>>
    %73 = tpu.memref_squeeze %72 : memref<1x1x1x128xf32, #tpu.memory_space<vmem>> -> memref<1x128xf32, #tpu.memory_space<vmem>>
    %74 = tpu.memref_slice %arg8[%12] : memref<2x!tpu.dma_semaphore, #tpu.memory_space<semaphore_mem>> -> memref<1x!tpu.dma_semaphore, #tpu.memory_space<semaphore_mem>>
    %75 = tpu.memref_squeeze %74 : memref<1x!tpu.dma_semaphore, #tpu.memory_space<semaphore_mem>> -> memref<!tpu.dma_semaphore, #tpu.memory_space<semaphore_mem>>
    tpu.wait_dma2 semaphore(%75 : memref<!tpu.dma_semaphore, #tpu.memory_space<semaphore_mem>>) src(%71 : memref<1x128xf32, #tpu.memory_space<any>>) dst(%73 : memref<1x128xf32, #tpu.memory_space<vmem>>)
    %76 = arith.index_cast %12 : i32 to index
    %c0 = arith.constant 0 : index
    %c0_63 = arith.constant 0 : index
    %c0_64 = arith.constant 0 : index
    %77 = vector.load %arg7[%76, %c0, %c0_63, %c0_64] : memref<2x1x8x128xf32, #tpu.memory_space<vmem>>, vector<1x1x8x128xf32>
    %78 = vector.shape_cast %77 : vector<1x1x8x128xf32> to vector<1x8x128xf32>
    %c0_65 = arith.constant 0 : index
    %c0_66 = arith.constant 0 : index
    %79 = vector.load %arg3[%c0_65, %c0_66] : memref<1x128xf32, #tpu.memory_space<vmem>>, vector<1x128xf32>
    %80 = vector.shape_cast %79 : vector<1x128xf32> to vector<128xf32>
    %81 = vector.shape_cast %80 : vector<128xf32> to vector<1x1x128xf32>
    %82 = vector.broadcast %81 : vector<1x1x128xf32> to vector<1x8x128xf32>
    %83 = arith.mulf %78, %82 : vector<1x8x128xf32>
    %cst = arith.constant dense<0.000000e+00> : vector<1x8xf32>
    %84 = vector.multi_reduction <add>, %83, %cst [2] : vector<1x8x128xf32> to vector<1x8xf32>
    %c0_67 = arith.constant 0 : index
    %c0_68 = arith.constant 0 : index
    %c0_69 = arith.constant 0 : index
    %85 = vector.load %arg2[%c0_67, %c0_68, %c0_69] : memref<1x1x8xf32, #tpu.memory_space<vmem>>, vector<1x1x8xf32>
    %86 = vector.shape_cast %85 : vector<1x1x8xf32> to vector<1x8xf32>
    %cst_70 = arith.constant 0.000000e+00 : f32
    %87 = vector.broadcast %cst_70 : f32 to vector<1x8xf32>
    %88 = arith.cmpf ogt, %86, %87 : vector<1x8xf32>
    %c0_71 = arith.constant 0 : index
    %89 = memref.load %arg4[%c0_71] : memref<1xf32, #tpu.memory_space<smem>>
    %90 = vector.broadcast %89 : f32 to vector<1x8xf32>
    %91 = arith.addf %84, %90 : vector<1x8xf32>
    %92 = arith.negf %91 : vector<1x8xf32>
    %93 = math.exp %92 : vector<1x8xf32>
    %cst_72 = arith.constant 1.000000e+00 : f32
    %94 = vector.broadcast %cst_72 : f32 to vector<1x8xf32>
    %95 = arith.addf %94, %93 : vector<1x8xf32>
    %96 = arith.divf %94, %95 : vector<1x8xf32>
    %cst_73 = arith.constant 0.000000e+00 : f32
    %97 = vector.broadcast %cst_73 : f32 to vector<1x8xf32>
    %98 = arith.select %88, %96, %97 : vector<1x8xi1>, vector<1x8xf32>
    %c0_74 = arith.constant 0 : index
    %c0_75 = arith.constant 0 : index
    %c0_76 = arith.constant 0 : index
    %99 = vector.load %arg6[%c0_74, %c0_75, %c0_76] : memref<1x1x8xf32, #tpu.memory_space<vmem>>, vector<1x1x8xf32>
    %100 = vector.shape_cast %99 : vector<1x1x8xf32> to vector<1x8xf32>
    %101 = vector.shape_cast %98 : vector<1x8xf32> to vector<1x1x8xf32>
    tpu.vector_store %arg6[%c0_74, %c0_75, %c0_76], %101 {strides = array<i32>} : memref<1x1x8xf32, #tpu.memory_space<vmem>>, vector<1x1x8xf32>,
    return
  }
  func.func @transform_0(%arg0: i32, %arg1: memref<2x8xi32, #tpu.memory_space<smem>>) -> (i32, i32, i32) {
    %c0_i32 = arith.constant 0 : i32
    %c0_i32_0 = arith.constant 0 : i32
    %c0_i32_1 = arith.constant 0 : i32
    return %arg0, %c0_i32, %c0_i32_0 : i32, i32, i32
  }
  func.func @transform_1(%arg0: i32, %arg1: memref<2x8xi32, #tpu.memory_space<smem>>) -> (i32, i32) {
    %c0_i32 = arith.constant 0 : i32
    %c0_i32_0 = arith.constant 0 : i32
    %c0_i32_1 = arith.constant 0 : i32
    return %c0_i32, %c0_i32_0 : i32, i32
  }
  func.func @transform_2(%arg0: i32, %arg1: memref<2x8xi32, #tpu.memory_space<smem>>) -> i32 {
    %c0_i32 = arith.constant 0 : i32
    %c0_i32_0 = arith.constant 0 : i32
    return %c0_i32 : i32
  }
  func.func @transform_4(%arg0: i32, %arg1: memref<2x8xi32, #tpu.memory_space<smem>>) -> (i32, i32, i32) {
    %c0_i32 = arith.constant 0 : i32
    %c0_i32_0 = arith.constant 0 : i32
    %c0_i32_1 = arith.constant 0 : i32
    return %arg0, %c0_i32, %c0_i32_0 : i32, i32, i32
  }
}

</mosaic_0001>

<llo_original>
// kernel: tpu_custom_call.1
$region0: #{tpu_custom_call.1}
  #allocation0 [shape = 'u32[]', space=smem, size = 0x4, offset = 0x4, fixed_abs, tag = 'smem constant byte address 0x4 - core index']
  #allocation1 [shape = 'u32[144,128]{1,0:T(1,128)}', space=vmem, size = 0x12000, scoped, tag = 'internal scratch']
  #allocation2 [shape = 'f32[2,1,8,128]{3,2,1,0:T(8,128)}', space=vmem, size = 0x2000, scoped, tag = 'scratch operand']
  #allocation3 [shape = 's32[2]{0}', space=sflag, size = 0x8, scoped, tag = 'scratch operand']
  #allocation4 [shape = 's32[1]{0}', space=sflag, size = 0x4, scoped, tag = 'scoped memory for tpu_custom_call.1']
  #allocation5 [shape = 'u8[1024]{0}', space=smem, size = 0x400, scoped, tag = 'prefetched SMEM operand 0']
  #allocation6 [shape = 'f32[1]{0:T(128)S(6)}', space=smem, size = 0x200, scoped, tag = 'scoped memory for tpu_custom_call.1']
  #allocation9 [shape = 's32[]', space=sflag, size = 0x4, offset = 0, fixed_abs, tag = 'sflag constant byte address 0x0 - dummy sync flag']
  #allocation10 [shape = 's32[]', space=sflag, size = 0x4, offset = 0, fixed_abs, tag = 'sflag constant byte address 0x0 - dummy sync flag']
  #allocation11 [shape = 'u32[]', space=smem, size = 0x4, offset = 0x44, fixed_abs, tag = 'smem constant byte address 0x44 - assertion arg 0']
  #allocation12 [shape = 'u32[]', space=smem, size = 0x4, offset = 0x48, fixed_abs, tag = 'smem constant byte address 0x48 - assertion arg 1']
  #allocation13 [shape = 's32[]', space=sflag, size = 0x4, offset = 0, fixed_abs, tag = 'sflag constant byte address 0x0 - dummy sync flag']
  #allocation14 [shape = 's32[]', space=sflag, size = 0x4, offset = 0, fixed_abs, tag = 'sflag constant byte address 0x0 - dummy sync flag']
  #allocation15 [shape = 's32[]', space=sflag, size = 0x4, offset = 0, fixed_abs, tag = 'sflag constant byte address 0x0 - dummy sync flag']
  #allocation16 [shape = 's32[]', space=sflag, size = 0x4, offset = 0, fixed_abs, tag = 'sflag constant byte address 0x0 - dummy sync flag']
  #allocation17 [shape = 's32[]', space=sflag, size = 0x4, offset = 0, fixed_abs, tag = 'sflag constant byte address 0x0 - dummy sync flag']
  #allocation18 [shape = 's32[]', space=sflag, size = 0x4, offset = 0, fixed_abs, tag = 'sflag constant byte address 0x0 - dummy sync flag']
  #allocation19 [shape = 's32[]', space=sflag, size = 0x4, offset = 0, fixed_abs, tag = 'sflag constant byte address 0x0 - dummy sync flag']
  #allocation20 [shape = 's32[]', space=sflag, size = 0x4, offset = 0, fixed_abs, tag = 'sflag constant byte address 0x0 - dummy sync flag']
  #allocation21 [shape = 's32[]', space=sflag, size = 0x4, offset = 0, fixed_abs, tag = 'sflag constant byte address 0x0 - dummy sync flag']
  #allocation22 [shape = 's32[]', space=sflag, size = 0x4, offset = 0, fixed_abs, tag = 'sflag constant byte address 0x0 - dummy sync flag']
  #allocation23 [shape = 's32[]', space=sflag, size = 0x4, offset = 0, fixed_abs, tag = 'sflag constant byte address 0x0 - dummy sync flag']
  #allocation24 [shape = 's32[]', space=sflag, size = 0x4, offset = 0, fixed_abs, tag = 'sflag constant byte address 0x0 - dummy sync flag']
  #allocation25 [shape = 's32[]', space=sflag, size = 0x4, offset = 0, fixed_abs, tag = 'sflag constant byte address 0x0 - dummy sync flag']
  #allocation26 [shape = 's32[]', space=sflag, size = 0x4, offset = 0, fixed_abs, tag = 'sflag constant byte address 0x0 - dummy sync flag']
  #allocation27 [shape = 's32[]', space=sflag, size = 0x4, offset = 0, fixed_abs, tag = 'sflag constant byte address 0x0 - dummy sync flag']
  #allocation28 [shape = 's32[]', space=sflag, size = 0x4, offset = 0, fixed_abs, tag = 'sflag constant byte address 0x0 - dummy sync flag']
  #allocation29 [shape = 's32[]', space=sflag, size = 0x4, offset = 0, fixed_abs, tag = 'sflag constant byte address 0x0 - dummy sync flag']
  #allocation30 [shape = 's32[]', space=sflag, size = 0x4, offset = 0, fixed_abs, tag = 'sflag constant byte address 0x0 - dummy sync flag']
  #allocation31 [shape = 's32[]', space=sflag, size = 0x4, offset = 0, fixed_abs, tag = 'sflag constant byte address 0x0 - dummy sync flag']
  #allocation32 [shape = 's32[]', space=sflag, size = 0x4, offset = 0, fixed_abs, tag = 'sflag constant byte address 0x0 - dummy sync flag']
  #allocation33 [shape = 's32[]', space=sflag, size = 0x4, offset = 0, fixed_abs, tag = 'sflag constant byte address 0x0 - dummy sync flag']
  #allocation34 [shape = 's32[]', space=sflag, size = 0x4, offset = 0, fixed_abs, tag = 'sflag constant byte address 0x0 - dummy sync flag']
  #allocation35 [shape = 's32[]', space=sflag, size = 0x4, offset = 0, fixed_abs, tag = 'sflag constant byte address 0x0 - dummy sync flag']
  #allocation36 [shape = 's32[]', space=sflag, size = 0x4, offset = 0, fixed_abs, tag = 'sflag constant byte address 0x0 - dummy sync flag']
  #allocation37 [shape = 's32[]', space=sflag, size = 0x4, offset = 0, fixed_abs, tag = 'sflag constant byte address 0x0 - dummy sync flag']
  #allocation38 [shape = 's32[]', space=sflag, size = 0x4, offset = 0, fixed_abs, tag = 'sflag constant byte address 0x0 - dummy sync flag']
  #allocation39 [shape = 's32[]', space=sflag, size = 0x4, offset = 0, fixed_abs, tag = 'sflag constant byte address 0x0 - dummy sync flag']
  #allocation40 [shape = 's32[]', space=sflag, size = 0x4, offset = 0, fixed_abs, tag = 'sflag constant byte address 0x0 - dummy sync flag']
  #allocation41 [shape = 's32[]', space=sflag, size = 0x4, offset = 0, fixed_abs, tag = 'sflag constant byte address 0x0 - dummy sync flag']
  #allocation42 [shape = 's32[]', space=sflag, size = 0x4, offset = 0, fixed_abs, tag = 'sflag constant byte address 0x0 - dummy sync flag']
  %s0 = inlined_call_operand.vmem [shape: s32[2,8], index: 0, kind: input, shape index: {}]
  %s1 = inlined_call_operand.vmem [shape: f32[2,1,8], index: 1, kind: input, shape index: {}]
  %s2 = inlined_call_operand.vmem [shape: f32[1,128], index: 2, kind: input, shape index: {}]
  %s3 = inlined_call_operand.<no memory space> [shape: f32[1], index: 3, kind: input, shape index: {}]
  %s4 = inlined_call_operand.hbm [shape: f32[2,16,128], index: 4, kind: input, shape index: {}]
  %s5 = inlined_call_operand.hbm [shape: f32[2,1,8], index: 5, kind: output, shape index: {}]
  %s6 = sld [smem:[#allocation0]]
  $region117: #{tpu_custom_call.1} parent=0
    _
  %s8 = ssub.s32 1, %s6
  %s9 = scalar_select 0, %s8, %s6
  %s10 = sshll.u32 %s0, 4
  %s11 = int_to_ptr.vmem [resolvable:$true] %s10
  %13 = dma.vmem_to_smem %s11, 32, [#allocation5], [#allocation4]
  %14 = sst [smem:[#allocation6]] %s3
  %15 = dma.done [#allocation4], 32
  %16 = sfence
  $region1: #{tpu_custom_call.1} parent=0
    #allocation7 [shape = 'u8[1024]{0}', space=vmem, size = 0x400, scoped, tag = 'output window, operand 0']
    #allocation8 [shape = 's32[2]{0}', space=sflag, size = 0x8, scoped, tag = 'scoped memory for tpu_custom_call.1']
    %17 = vsyncpa [#allocation8], 0
    %s18 = scalar_lea.sflag [#allocation8], 1
    %19 = vsyncpa %s18, 0
    loop: start=0, step=1, limit=4
    $region2: #{tpu_custom_call.1} parent=1 // loop_pre_header
      _
    $region3: #{tpu_custom_call.1} parent=1 // loop_header
      %s21 = sphi 0, %s25
      %p22 = scmp.ge.s32.totalorder %s21, 4
      %s31 = sphi 0, %s33
      %s34 = sphi 0, %s31
      %s35 = sphi 0, %s34
      %s51 = sphi 0, %s35
      %s55 = sphi 0, %s55
      %s57 = sphi 0, %s55
      %s58 = sphi 0, %s57
      %s72 = sphi 0, %s58
      %s76 = sphi 0, %s76
      %s78 = sphi 0, %s76
      %s79 = sphi 0, %s78
      %s93 = sphi 0, %s79
      %s99 = sphi 0, %s101
      %s102 = sphi 0, %s99
      %s103 = sphi 0, %s102
      %s119 = sphi 0, %s103
    $region4: #{tpu_custom_call.1} parent=1 // loop_header_branch
      %24 = sbr.rel (%p22) target = $region8
    $region5: #{tpu_custom_call.1} parent=1 // loop_body
      %s26 = ssub.s32 %s21, 1
      %s27 = ssub.s32 %s21, 2
      %s28 = sadd.s32 %s21, 1
      %s29 = ssub.s32 %s21, %s28
      %p30 = scmp.eq.s32.totalorder %s29, 0
      %s32 = sadd.s32 %s31, 1
      %s33 = scalar_select %p30, %s31, %s32
      %p36 = pneg %p30
      %p37 = scmp.eq.s32.totalorder %s21, 1
      %p38 = por %p36, %p37
      %p39 = scmp.ne.s32.totalorder %s31, %s34
      %p40 = scmp.eq.s32.totalorder %s21, 0
      %p41 = por %p39, %p40
      %p42 = scmp.ne.s32.totalorder %s31, %s34
      %p43 = scmp.eq.s32.totalorder %s26, 1
      %p44 = por %p42, %p43
      %p45 = scmp.ne.s32.totalorder %s34, %s35
      %p46 = scmp.eq.s32.totalorder %s26, 0
      %p47 = por %p45, %p46
      %p48 = scmp.ne.s32.totalorder %s34, %s35
      %p49 = scmp.eq.s32.totalorder %s27, 1
      %p50 = por %p48, %p49
      %p52 = scmp.ne.s32.totalorder %s35, %s51
      %p53 = scmp.eq.s32.totalorder %s27, 0
      %p54 = por %p52, %p53
      %s56 = sadd.s32 %s55, 1
      %p59 = scmp.eq.s32.totalorder %s21, 1
      %p60 = scmp.ne.s32.totalorder %s55, %s57
      %p61 = scmp.eq.s32.totalorder %s21, 0
      %p62 = por %p60, %p61
      %p63 = scmp.ne.s32.totalorder %s55, %s57
      %p64 = scmp.eq.s32.totalorder %s26, 1
      %p65 = por %p63, %p64
      %p66 = scmp.ne.s32.totalorder %s57, %s58
      %p67 = scmp.eq.s32.totalorder %s26, 0
      %p68 = por %p66, %p67
      %p69 = scmp.ne.s32.totalorder %s57, %s58
      %p70 = scmp.eq.s32.totalorder %s27, 1
      %p71 = por %p69, %p70
      %p73 = scmp.ne.s32.totalorder %s58, %s72
      %p74 = scmp.eq.s32.totalorder %s27, 0
      %p75 = por %p73, %p74
      %s77 = sadd.s32 %s76, 1
      %p80 = scmp.eq.s32.totalorder %s21, 1
      %p81 = scmp.ne.s32.totalorder %s76, %s78
      %p82 = scmp.eq.s32.totalorder %s21, 0
      %p83 = por %p81, %p82
      %p84 = scmp.ne.s32.totalorder %s76, %s78
      %p85 = scmp.eq.s32.totalorder %s26, 1
      %p86 = por %p84, %p85
      %p87 = scmp.ne.s32.totalorder %s78, %s79
      %p88 = scmp.eq.s32.totalorder %s26, 0
      %p89 = por %p87, %p88
      %p90 = scmp.ne.s32.totalorder %s78, %s79
      %p91 = scmp.eq.s32.totalorder %s27, 1
      %p92 = por %p90, %p91
      %p94 = scmp.ne.s32.totalorder %s79, %s93
      %p95 = scmp.eq.s32.totalorder %s27, 0
      %p96 = por %p94, %p95
      %s97 = ssub.s32 %s21, %s28
      %p98 = scmp.eq.s32.totalorder %s97, 0
      %s100 = sadd.s32 %s99, 1
      %s101 = scalar_select %p98, %s99, %s100
      %p104 = pneg %p98
      %p105 = scmp.eq.s32.totalorder %s21, 1
      %p106 = por %p104, %p105
      %p107 = scmp.ne.s32.totalorder %s99, %s102
      %p108 = scmp.eq.s32.totalorder %s21, 0
      %p109 = por %p107, %p108
      %p110 = scmp.ne.s32.totalorder %s99, %s102
      %p111 = scmp.eq.s32.totalorder %s26, 1
      %p112 = por %p110, %p111
      %p113 = scmp.ne.s32.totalorder %s102, %s103
      %p114 = scmp.eq.s32.totalorder %s26, 0
      %p115 = por %p113, %p114
      %p116 = scmp.ne.s32.totalorder %s102, %s103
      %p117 = scmp.eq.s32.totalorder %s27, 1
      %p118 = por %p116, %p117
      %p120 = scmp.ne.s32.totalorder %s103, %s119
      %p121 = scmp.eq.s32.totalorder %s27, 0
      %p122 = por %p120, %p121
      %p123 = scmp.le.s32.totalorder 1, %s21
      %p124 = scmp.lt.s32.totalorder %s21, 3
      %p125 = pnand %p123, %p124
      %p126 = pneg %p125
      // Predicated region
      $region9: #{tpu_custom_call.1} parent=5 // pred_check
        _
      $region10: #{tpu_custom_call.1} parent=5 // pred_check_branch
        %128 = sbr.rel (%p125) target = $region12
      $region11: #{tpu_custom_call.1} parent=5 // pred_region
        %s129 = ssub.s32 %s21, 1
        // Predicated region
        $region13: #{tpu_custom_call.1} parent=11 // pred_check
          %p130 = pneg %p68
        $region14: #{tpu_custom_call.1} parent=11 // pred_check_branch
          %132 = sbr.rel (%p130) target = $region16
        $region15: #{tpu_custom_call.1} parent=11 // pred_region
          _
        $region16: #{tpu_custom_call.1} parent=11 // pred_fallthru
          _
        // Predicated region
        $region17: #{tpu_custom_call.1} parent=11 // pred_check
          %p133 = pneg %p89
        $region18: #{tpu_custom_call.1} parent=11 // pred_check_branch
          %135 = sbr.rel (%p133) target = $region20
        $region19: #{tpu_custom_call.1} parent=11 // pred_region
          _
        $region20: #{tpu_custom_call.1} parent=11 // pred_fallthru
          _
      $region12: #{tpu_custom_call.1} parent=5 // pred_fallthru
        _
      %p136 = scmp.lt.s32.totalorder %s21, 2
      // Predicated region
      $region21: #{tpu_custom_call.1} parent=5 // pred_check
        %p137 = pneg %p136
      $region22: #{tpu_custom_call.1} parent=5 // pred_check_branch
        %139 = sbr.rel (%p137) target = $region24
      $region23: #{tpu_custom_call.1} parent=5 // pred_region
        // Predicated region
        $region25: #{tpu_custom_call.1} parent=23 // pred_check
          %p140 = pneg %p41
        $region26: #{tpu_custom_call.1} parent=23 // pred_check_branch
          %142 = sbr.rel (%p140) target = $region28
        $region27: #{tpu_custom_call.1} parent=23 // pred_region
          %p143 = scmp.lt.s32.totalorder %s21, 1
          %s144 = scalar_select %p143, %s21, 1
          %s145 = scalar_lea.vmem %s1, %s144
        $region28: #{tpu_custom_call.1} parent=23 // pred_fallthru
          _
      $region24: #{tpu_custom_call.1} parent=5 // pred_fallthru
        _
      %p146 = scmp.le.s32.totalorder 1, %s21
      %p147 = scmp.lt.s32.totalorder %s21, 3
      %p148 = pnand %p146, %p147
      %p149 = pneg %p148
      // Predicated region
      $region29: #{tpu_custom_call.1} parent=5 // pred_check
        _
      $region30: #{tpu_custom_call.1} parent=5 // pred_check_branch
        %151 = sbr.rel (%p148) target = $region32
      $region31: #{tpu_custom_call.1} parent=5 // pred_region
        %s152 = ssub.s32 %s21, 1
        %p153 = scmp.lt.s32.totalorder %s26, 1
        %s154 = scalar_select %p153, %s26, 1
        %s155 = scalar_lea.vmem %s1, %s154
        %p156 = pneg %p47
        %p157 = pneg %p44
        %p158 = pneg %p68
        %p159 = pneg %p65
        %p160 = pneg %p89
        %p161 = pneg %p86
        %p162 = pneg %p115
        %p163 = pneg %p112
        %s164 = sand.u32 %s102, 1
        %s165 = scalar_lea.sflag [#allocation8], %s164
        %s166 = sand.u32 %s102, 1
        %s167 = scalar_lea.vmem [#allocation7], %s166
        %p168 = scmp.lt.s32.totalorder %s26, 1
        %s169 = scalar_select %p168, %s26, 1
        %s170 = scalar_lea.vmem %s1, %s169
        %p171 = scmp.eq.s32.totalorder %s26, 0
        // Predicated region
        $region33: #{tpu_custom_call.1} parent=31 // pred_check
          %p172 = pneg %p171
        $region34: #{tpu_custom_call.1} parent=31 // pred_check_branch
          %174 = sbr.rel (%p172) target = $region36
        $region35: #{tpu_custom_call.1} parent=31 // pred_region
          %s175 = sld [smem:[#allocation5]]
          %s176 = smul.addr %s175, 16
          %s177 = scalar_lea.hbm %s4, %s176
          // Predicated region
          $region37: #{tpu_custom_call.1} parent=35 // pred_check
            _
          $region38: #{tpu_custom_call.1} parent=35 // pred_check_branch
            %179 = sbr.rel target = $region40
          $region39: #{tpu_custom_call.1} parent=35 // pred_region
            %180 = sst [smem:[#allocation11]] [#allocation10]
            %181 = sst [smem:[#allocation12]] [#allocation9]
          $region40: #{tpu_custom_call.1} parent=35 // pred_fallthru
            _
          %183 = shalt.err (0)
          %s185 = sshll.u32 [#allocation2], 4
          %s186 = int_to_ptr.vmem [resolvable:$true] %s185
          %188 = dma.hbm_to_vmem [thread:$0]  %s177, 16, %s186, [#allocation3]
          %s189 = sld [smem:[#allocation5 + $0x1]]
          %s190 = smul.addr %s189, 16
          %s191 = scalar_lea.hbm %s4, %s190
          %s192 = scalar_lea.vmem [#allocation2], 1
          // Predicated region
          $region41: #{tpu_custom_call.1} parent=35 // pred_check
            _
          $region42: #{tpu_custom_call.1} parent=35 // pred_check_branch
            %194 = sbr.rel target = $region44
          $region43: #{tpu_custom_call.1} parent=35 // pred_region
            %195 = sst [smem:[#allocation11]] [#allocation14]
            %196 = sst [smem:[#allocation12]] [#allocation13]
          $region44: #{tpu_custom_call.1} parent=35 // pred_fallthru
            _
          %198 = shalt.err (0)
          %s200 = sshll.u32 %s192, 4
          %s201 = int_to_ptr.vmem [resolvable:$true] %s200
          %203 = dma.hbm_to_vmem [thread:$0]  %s191, 16, %s201, [#allocation3]
          %s204 = sld [smem:[#allocation5 + $0x2]]
          %s205 = smul.addr %s204, 16
          %s206 = scalar_lea.hbm %s4, %s205
          %s207 = scalar_lea.vmem [#allocation2], 2
          // Predicated region
          $region45: #{tpu_custom_call.1} parent=35 // pred_check
            _
          $region46: #{tpu_custom_call.1} parent=35 // pred_check_branch
            %209 = sbr.rel target = $region48
          $region47: #{tpu_custom_call.1} parent=35 // pred_region
            %210 = sst [smem:[#allocation11]] [#allocation16]
            %211 = sst [smem:[#allocation12]] [#allocation15]
          $region48: #{tpu_custom_call.1} parent=35 // pred_fallthru
            _
          %213 = shalt.err (0)
          %s215 = sshll.u32 %s207, 4
          %s216 = int_to_ptr.vmem [resolvable:$true] %s215
          %218 = dma.hbm_to_vmem [thread:$0]  %s206, 16, %s216, [#allocation3]
          %s219 = sld [smem:[#allocation5 + $0x3]]
          %s220 = smul.addr %s219, 16
          %s221 = scalar_lea.hbm %s4, %s220
          %s222 = scalar_lea.vmem [#allocation2], 3
          // Predicated region
          $region49: #{tpu_custom_call.1} parent=35 // pred_check
            _
          $region50: #{tpu_custom_call.1} parent=35 // pred_check_branch
            %224 = sbr.rel target = $region52
          $region51: #{tpu_custom_call.1} parent=35 // pred_region
            %225 = sst [smem:[#allocation11]] [#allocation18]
            %226 = sst [smem:[#allocation12]] [#allocation17]
          $region52: #{tpu_custom_call.1} parent=35 // pred_fallthru
            _
          %228 = shalt.err (0)
          %s230 = sshll.u32 %s222, 4
          %s231 = int_to_ptr.vmem [resolvable:$true] %s230
          %233 = dma.hbm_to_vmem [thread:$0]  %s221, 16, %s231, [#allocation3]
          %s234 = sld [smem:[#allocation5 + $0x4]]
          %s235 = smul.addr %s234, 16
          %s236 = scalar_lea.hbm %s4, %s235
          %s237 = scalar_lea.vmem [#allocation2], 4
          // Predicated region
          $region53: #{tpu_custom_call.1} parent=35 // pred_check
            _
          $region54: #{tpu_custom_call.1} parent=35 // pred_check_branch
            %239 = sbr.rel target = $region56
          $region55: #{tpu_custom_call.1} parent=35 // pred_region
            %240 = sst [smem:[#allocation11]] [#allocation20]
            %241 = sst [smem:[#allocation12]] [#allocation19]
          $region56: #{tpu_custom_call.1} parent=35 // pred_fallthru
            _
          %243 = shalt.err (0)
          %s245 = sshll.u32 %s237, 4
          %s246 = int_to_ptr.vmem [resolvable:$true] %s245
          %248 = dma.hbm_to_vmem [thread:$0]  %s236, 16, %s246, [#allocation3]
          %s249 = sld [smem:[#allocation5 + $0x5]]
          %s250 = smul.addr %s249, 16
          %s251 = scalar_lea.hbm %s4, %s250
          %s252 = scalar_lea.vmem [#allocation2], 5
          // Predicated region
          $region57: #{tpu_custom_call.1} parent=35 // pred_check
            _
          $region58: #{tpu_custom_call.1} parent=35 // pred_check_branch
            %254 = sbr.rel target = $region60
          $region59: #{tpu_custom_call.1} parent=35 // pred_region
            %255 = sst [smem:[#allocation11]] [#allocation22]
            %256 = sst [smem:[#allocation12]] [#allocation21]
          $region60: #{tpu_custom_call.1} parent=35 // pred_fallthru
            _
          %258 = shalt.err (0)
          %s260 = sshll.u32 %s252, 4
          %s261 = int_to_ptr.vmem [resolvable:$true] %s260
          %263 = dma.hbm_to_vmem [thread:$0]  %s251, 16, %s261, [#allocation3]
          %s264 = sld [smem:[#allocation5 + $0x6]]
          %s265 = smul.addr %s264, 16
          %s266 = scalar_lea.hbm %s4, %s265
          %s267 = scalar_lea.vmem [#allocation2], 6
          // Predicated region
          $region61: #{tpu_custom_call.1} parent=35 // pred_check
            _
          $region62: #{tpu_custom_call.1} parent=35 // pred_check_branch
            %269 = sbr.rel target = $region64
          $region63: #{tpu_custom_call.1} parent=35 // pred_region
            %270 = sst [smem:[#allocation11]] [#allocation24]
            %271 = sst [smem:[#allocation12]] [#allocation23]
          $region64: #{tpu_custom_call.1} parent=35 // pred_fallthru
            _
          %273 = shalt.err (0)
          %s275 = sshll.u32 %s267, 4
          %s276 = int_to_ptr.vmem [resolvable:$true] %s275
          %278 = dma.hbm_to_vmem [thread:$0]  %s266, 16, %s276, [#allocation3]
          %s279 = sld [smem:[#allocation5 + $0x7]]
          %s280 = smul.addr %s279, 16
          %s281 = scalar_lea.hbm %s4, %s280
          %s282 = scalar_lea.vmem [#allocation2], 7
          // Predicated region
          $region65: #{tpu_custom_call.1} parent=35 // pred_check
            _
          $region66: #{tpu_custom_call.1} parent=35 // pred_check_branch
            %284 = sbr.rel target = $region68
          $region67: #{tpu_custom_call.1} parent=35 // pred_region
            %285 = sst [smem:[#allocation11]] [#allocation26]
            %286 = sst [smem:[#allocation12]] [#allocation25]
          $region68: #{tpu_custom_call.1} parent=35 // pred_fallthru
            _
          %288 = shalt.err (0)
          %s290 = sshll.u32 %s282, 4
          %s291 = int_to_ptr.vmem [resolvable:$true] %s290
          %293 = dma.hbm_to_vmem [thread:$0]  %s281, 16, %s291, [#allocation3]
        $region36: #{tpu_custom_call.1} parent=31 // pred_fallthru
          _
        %p294 = scmp.lt.s32.totalorder %s26, 0
        %s295 = ssub.s32 0, %s26
        %s296 = scalar_select %p294, %s295, %s26
        %s297 = sand.u32 %s296, 1
        %s298 = ssub.s32 0, %s297
        %s299 = scalar_select %p294, %s298, %s297
        %p300 = scmp.ne.s32.totalorder %s299, 0
        %p301 = scmp.lt.s32.totalorder %s299, 0
        %p302 = pnand %p301, %p300
        %p303 = pneg %p302
        %s304 = sadd.s32 %s299, 2
        %s305 = scalar_select %p303, %s304, %s299
        %s306 = sadd.s32 %s26, 1
        %p307 = scmp.lt.s32.totalorder %s306, 0
        %s308 = ssub.s32 0, %s306
        %s309 = scalar_select %p307, %s308, %s306
        %s310 = sand.u32 %s309, 1
        %s311 = ssub.s32 0, %s310
        %s312 = scalar_select %p307, %s311, %s310
        %p313 = scmp.ne.s32.totalorder %s312, 0
        %p314 = scmp.lt.s32.totalorder %s312, 0
        %p315 = pnand %p314, %p313
        %p316 = pneg %p315
        %s317 = sadd.s32 %s312, 2
        %s318 = scalar_select %p316, %s317, %s312
        %p319 = scmp.lt.s32.totalorder %s306, 2
        // Predicated region
        $region69: #{tpu_custom_call.1} parent=31 // pred_check
          %p320 = pneg %p319
        $region70: #{tpu_custom_call.1} parent=31 // pred_check_branch
          %322 = sbr.rel (%p320) target = $region72
        $region71: #{tpu_custom_call.1} parent=31 // pred_region
          %p323 = scmp.lt.s32.totalorder %s306, 1
          %s324 = scalar_select %p323, %s306, 1
          %s325 = smul.u32 %s324, 128
          %s326 = sld [smem:[#allocation5 + %s325]]
          %s327 = smul.u32 %s324, 16
          %s328 = sadd.s32 %s326, %s327
          %s329 = smul.addr %s328, 16
          %s330 = scalar_lea.hbm %s4, %s329
          %s331 = smul.u32 %s318, 8
          %s332 = scalar_lea.vmem [#allocation2], %s331
          %s333 = scalar_lea.sflag [#allocation3], %s318
          // Predicated region
          $region73: #{tpu_custom_call.1} parent=71 // pred_check
            _
          $region74: #{tpu_custom_call.1} parent=71 // pred_check_branch
            %335 = sbr.rel target = $region76
          $region75: #{tpu_custom_call.1} parent=71 // pred_region
            %336 = sst [smem:[#allocation11]] [#allocation28]
            %337 = sst [smem:[#allocation12]] [#allocation27]
          $region76: #{tpu_custom_call.1} parent=71 // pred_fallthru
            _
          %339 = shalt.err (0)
          %s341 = sshll.u32 %s332, 4
          %s342 = int_to_ptr.vmem [resolvable:$true] %s341
          %344 = dma.hbm_to_vmem [thread:$0]  %s330, 16, %s342, %s333
          %s345 = sadd.s32 %s325, 1
          %s346 = sld [smem:[#allocation5 + %s345]]
          %s347 = sadd.s32 %s346, %s327
          %s348 = smul.addr %s347, 16
          %s349 = scalar_lea.hbm %s4, %s348
          %s350 = sadd.s32 1, %s331
          %s351 = scalar_lea.vmem [#allocation2], %s350
          // Predicated region
          $region77: #{tpu_custom_call.1} parent=71 // pred_check
            _
          $region78: #{tpu_custom_call.1} parent=71 // pred_check_branch
            %353 = sbr.rel target = $region80
          $region79: #{tpu_custom_call.1} parent=71 // pred_region
            %354 = sst [smem:[#allocation11]] [#allocation30]
            %355 = sst [smem:[#allocation12]] [#allocation29]
          $region80: #{tpu_custom_call.1} parent=71 // pred_fallthru
            _
          %357 = shalt.err (0)
          %s359 = sshll.u32 %s351, 4
          %s360 = int_to_ptr.vmem [resolvable:$true] %s359
          %362 = dma.hbm_to_vmem [thread:$0]  %s349, 16, %s360, %s333
          %s363 = sadd.s32 %s325, 2
          %s364 = sld [smem:[#allocation5 + %s363]]
          %s365 = sadd.s32 %s364, %s327
          %s366 = smul.addr %s365, 16
          %s367 = scalar_lea.hbm %s4, %s366
          %s368 = sadd.s32 2, %s331
          %s369 = scalar_lea.vmem [#allocation2], %s368
          // Predicated region
          $region81: #{tpu_custom_call.1} parent=71 // pred_check
            _
          $region82: #{tpu_custom_call.1} parent=71 // pred_check_branch
            %371 = sbr.rel target = $region84
          $region83: #{tpu_custom_call.1} parent=71 // pred_region
            %372 = sst [smem:[#allocation11]] [#allocation32]
            %373 = sst [smem:[#allocation12]] [#allocation31]
          $region84: #{tpu_custom_call.1} parent=71 // pred_fallthru
            _
          %375 = shalt.err (0)
          %s377 = sshll.u32 %s369, 4
          %s378 = int_to_ptr.vmem [resolvable:$true] %s377
          %380 = dma.hbm_to_vmem [thread:$0]  %s367, 16, %s378, %s333
          %s381 = sadd.s32 %s325, 3
          %s382 = sld [smem:[#allocation5 + %s381]]
          %s383 = sadd.s32 %s382, %s327
          %s384 = smul.addr %s383, 16
          %s385 = scalar_lea.hbm %s4, %s384
          %s386 = sadd.s32 3, %s331
          %s387 = scalar_lea.vmem [#allocation2], %s386
          // Predicated region
          $region85: #{tpu_custom_call.1} parent=71 // pred_check
            _
          $region86: #{tpu_custom_call.1} parent=71 // pred_check_branch
            %389 = sbr.rel target = $region88
          $region87: #{tpu_custom_call.1} parent=71 // pred_region
            %390 = sst [smem:[#allocation11]] [#allocation34]
            %391 = sst [smem:[#allocation12]] [#allocation33]
          $region88: #{tpu_custom_call.1} parent=71 // pred_fallthru
            _
          %393 = shalt.err (0)
          %s395 = sshll.u32 %s387, 4
          %s396 = int_to_ptr.vmem [resolvable:$true] %s395
          %398 = dma.hbm_to_vmem [thread:$0]  %s385, 16, %s396, %s333
          %s399 = sadd.s32 %s325, 4
          %s400 = sld [smem:[#allocation5 + %s399]]
          %s401 = sadd.s32 %s400, %s327
          %s402 = smul.addr %s401, 16
          %s403 = scalar_lea.hbm %s4, %s402
          %s404 = sadd.s32 4, %s331
          %s405 = scalar_lea.vmem [#allocation2], %s404
          // Predicated region
          $region89: #{tpu_custom_call.1} parent=71 // pred_check
            _
          $region90: #{tpu_custom_call.1} parent=71 // pred_check_branch
            %407 = sbr.rel target = $region92
          $region91: #{tpu_custom_call.1} parent=71 // pred_region
            %408 = sst [smem:[#allocation11]] [#allocation36]
            %409 = sst [smem:[#allocation12]] [#allocation35]
          $region92: #{tpu_custom_call.1} parent=71 // pred_fallthru
            _
          %411 = shalt.err (0)
          %s413 = sshll.u32 %s405, 4
          %s414 = int_to_ptr.vmem [resolvable:$true] %s413
          %416 = dma.hbm_to_vmem [thread:$0]  %s403, 16, %s414, %s333
          %s417 = sadd.s32 %s325, 5
          %s418 = sld [smem:[#allocation5 + %s417]]
          %s419 = sadd.s32 %s418, %s327
          %s420 = smul.addr %s419, 16
          %s421 = scalar_lea.hbm %s4, %s420
          %s422 = sadd.s32 5, %s331
          %s423 = scalar_lea.vmem [#allocation2], %s422
          // Predicated region
          $region93: #{tpu_custom_call.1} parent=71 // pred_check
            _
          $region94: #{tpu_custom_call.1} parent=71 // pred_check_branch
            %425 = sbr.rel target = $region96
          $region95: #{tpu_custom_call.1} parent=71 // pred_region
            %426 = sst [smem:[#allocation11]] [#allocation38]
            %427 = sst [smem:[#allocation12]] [#allocation37]
          $region96: #{tpu_custom_call.1} parent=71 // pred_fallthru
            _
          %429 = shalt.err (0)
          %s431 = sshll.u32 %s423, 4
          %s432 = int_to_ptr.vmem [resolvable:$true] %s431
          %434 = dma.hbm_to_vmem [thread:$0]  %s421, 16, %s432, %s333
          %s435 = sadd.s32 %s325, 6
          %s436 = sld [smem:[#allocation5 + %s435]]
          %s437 = sadd.s32 %s436, %s327
          %s438 = smul.addr %s437, 16
          %s439 = scalar_lea.hbm %s4, %s438
          %s440 = sadd.s32 6, %s331
          %s441 = scalar_lea.vmem [#allocation2], %s440
          // Predicated region
          $region97: #{tpu_custom_call.1} parent=71 // pred_check
            _
          $region98: #{tpu_custom_call.1} parent=71 // pred_check_branch
            %443 = sbr.rel target = $region100
          $region99: #{tpu_custom_call.1} parent=71 // pred_region
            %444 = sst [smem:[#allocation11]] [#allocation40]
            %445 = sst [smem:[#allocation12]] [#allocation39]
          $region100: #{tpu_custom_call.1} parent=71 // pred_fallthru
            _
          %447 = shalt.err (0)
          %s449 = sshll.u32 %s441, 4
          %s450 = int_to_ptr.vmem [resolvable:$true] %s449
          %452 = dma.hbm_to_vmem [thread:$0]  %s439, 16, %s450, %s333
          %s453 = sadd.s32 %s325, 7
          %s454 = sld [smem:[#allocation5 + %s453]]
          %s455 = sadd.s32 %s454, %s327
          %s456 = smul.addr %s455, 16
          %s457 = scalar_lea.hbm %s4, %s456
          %s458 = sadd.s32 7, %s331
          %s459 = scalar_lea.vmem [#allocation2], %s458
          // Predicated region
          $region101: #{tpu_custom_call.1} parent=71 // pred_check
            _
          $region102: #{tpu_custom_call.1} parent=71 // pred_check_branch
            %461 = sbr.rel target = $region104
          $region103: #{tpu_custom_call.1} parent=71 // pred_region
            %462 = sst [smem:[#allocation11]] [#allocation42]
            %463 = sst [smem:[#allocation12]] [#allocation41]
          $region104: #{tpu_custom_call.1} parent=71 // pred_fallthru
            _
          %465 = shalt.err (0)
          %s467 = sshll.u32 %s459, 4
          %s468 = int_to_ptr.vmem [resolvable:$true] %s467
          %470 = dma.hbm_to_vmem [thread:$0]  %s457, 16, %s468, %s333
        $region72: #{tpu_custom_call.1} parent=31 // pred_fallthru
          _
        %s471 = scalar_lea.sflag [#allocation3], %s305
        %s472 = smul.u32 1, 1
        %s473 = sshll.u32 %s472, 4
        %474 = dma.done %s471, %s473
        %s475 = sshll.u32 %s472, 4
        %476 = dma.done %s471, %s475
        %s477 = sshll.u32 %s472, 4
        %478 = dma.done %s471, %s477
        %s479 = sshll.u32 %s472, 4
        %480 = dma.done %s471, %s479
        %s481 = sshll.u32 %s472, 4
        %482 = dma.done %s471, %s481
        %s483 = sshll.u32 %s472, 4
        %484 = dma.done %s471, %s483
        %s485 = sshll.u32 %s472, 4
        %486 = dma.done %s471, %s485
        %s487 = sshll.u32 %s472, 4
        %488 = dma.done %s471, %s487
        %s489 = smul.u32 %s305, 8
        %s490 = scalar_lea.vmem [#allocation2], %s489
        %v491 = vld [vmem:[%s490] sm:$0xff]
        %v492 = vld [vmem:[%s2] sm:$0x1]
        %v494 = vlaneseq
        %v495 = vshrl.u32 %v494, 7
        %v496 = vsub.s32 0, %v495
        %v497 = vrot.slane %v492, %v496
        %v499 = vmul.f32 %v491, %v497
        %500 = vadd.xlane.f32.xlu0 %v499
        %v501 = vpop.xlane.xlu0 %500
        %v502 = vld [vmem:[%s170] sm:$0x1]
        %vm503 = vcmp.gt.f32.partialorder %v502, 0.0
        %s504 = sld [smem:[#allocation6]]
        %v505 = vstv %s504
        %v506 = vadd.f32 %v501, %v505
        %v507 = vxor.u32 %v506, 2147483648
        %v508 = vmul.f32 %v507, 1.442695
        %v509 = vpow.pop %v508
        %v510 = vadd.f32 %v509, 1.0
        %v511 = vrcp.pop %v510
        %v512 = vmul.f32 1.0, %v511
        %v514 = vlaneseq
        %v515 = vshrl.u32 %v514, 7
        %v516 = vsub.s32 0, %v515
        %v517 = vrot.slane %v512, %v516
        %v518 = vlaneseq
        %v519 = vshrl.u32 %v518, 7
        %v520 = vsub.s32 1, %v519
        %v521 = vrot.slane %v512, %v520
        %v522 = vlaneseq
        %v523 = vshrl.u32 %v522, 7
        %v524 = vsub.s32 2, %v523
        %v525 = vrot.slane %v512, %v524
        %v526 = vlaneseq
        %v527 = vshrl.u32 %v526, 7
        %v528 = vsub.s32 3, %v527
        %v529 = vrot.slane %v512, %v528
        %v530 = vlaneseq
        %v531 = vshrl.u32 %v530, 7
        %v532 = vsub.s32 4, %v531
        %v533 = vrot.slane %v512, %v532
        %v534 = vlaneseq
        %v535 = vshrl.u32 %v534, 7
        %v536 = vsub.s32 5, %v535
        %v537 = vrot.slane %v512, %v536
        %v538 = vlaneseq
        %v539 = vshrl.u32 %v538, 7
        %v540 = vsub.s32 6, %v539
        %v541 = vrot.slane %v512, %v540
        %v542 = vlaneseq
        %v543 = vshrl.u32 %v542, 7
        %v544 = vsub.s32 7, %v543
        %v545 = vrot.slane %v512, %v544
        %v546 = vcombine.low %v517, %v521
        %v547 = vcombine.low %v525, %v529
        %v548 = vcombine.low %v533, %v537
        %v549 = vcombine.low %v541, %v545
        %v551 = vunpack.c.l.s4 1966171168
        %v552 = vunpack.c.0.s8 %v551
        %v553 = vlaneseq
        %v554 = vshrl.u32 %v553, 7
        %v555 = vsub.s32 %v552, %v554
        %v556 = vrot.slane %v546, %v555
        %v558 = vunpack.c.l.s4 1966171168
        %v559 = vunpack.c.0.s8 %v558
        %v560 = vlaneseq
        %v561 = vshrl.u32 %v560, 7
        %v562 = vsub.s32 %v559, %v561
        %v563 = vrot.slane %v547, %v562
        %v565 = vunpack.c.l.s4 1966171168
        %v566 = vunpack.c.0.s8 %v565
        %v567 = vlaneseq
        %v568 = vshrl.u32 %v567, 7
        %v569 = vsub.s32 %v566, %v568
        %v570 = vrot.slane %v548, %v569
        %v572 = vunpack.c.l.s4 1966171168
        %v573 = vunpack.c.0.s8 %v572
        %v574 = vlaneseq
        %v575 = vshrl.u32 %v574, 7
        %v576 = vsub.s32 %v573, %v575
        %v577 = vrot.slane %v549, %v576
        %v578 = vcombine.low %v556, %v563
        %v579 = vcombine.low %v570, %v577
        %v581 = vunpack.c.l.s4 1966171168
        %v582 = vunpack.c.0.s8 %v581
        %v583 = vlaneseq
        %v584 = vshrl.u32 %v583, 7
        %v585 = vsub.s32 %v582, %v584
        %v586 = vrot.slane %v578, %v585
        %v588 = vunpack.c.l.s4 1966171168
        %v589 = vunpack.c.0.s8 %v588
        %v590 = vlaneseq
        %v591 = vshrl.u32 %v590, 7
        %v592 = vsub.s32 %v589, %v591
        %v593 = vrot.slane %v579, %v592
        %v594 = vcombine.low %v586, %v593
        %595 = vset.pattern.permute.xlu0 0
        %596 = vperm.xlu0 %595, %v594
        %v597 = vpop.permute.xlu0 %596
        %v598 = vlaneseq
        %v599 = vand.u32 %v598, 127
        %v600 = vlaneseq
        %v601 = vshrl.u32 %v600, 7
        %v602 = vsub.s32 %v599, %v601
        %v603 = vrot.slane %v597, %v602
        %v605 = vunpack.c.l.s4 1966171168
        %v606 = vunpack.c.0.s8 %v605
        %v607 = vlaneseq
        %v608 = vshrl.u32 %v607, 7
        %v609 = vsub.s32 %v606, %v608
        %v610 = vrot.slane %v603, %v609
        %v612 = vunpack.c.l.s4 1966171168
        %v613 = vunpack.c.0.s8 %v612
        %v614 = vlaneseq
        %v615 = vshrl.u32 %v614, 7
        %v616 = vsub.s32 %v613, %v615
        %v617 = vrot.slane %v610, %v616
        %v619 = vsel %vm503, %v617, 0.0
        %vm620 = vcmask 57344
        %621 = vst.msk [vmem:[%s167] sm:$0x1] %vm620, %v619
        %s622 = sand.u32 %s102, 1
        %s623 = scalar_lea.sflag [#allocation8], %s622
        %s624 = sand.u32 %s102, 1
        %s625 = scalar_lea.vmem [#allocation7], %s624
        // Predicated region
        $region105: #{tpu_custom_call.1} parent=31 // pred_check
          %p626 = pneg %p112
        $region106: #{tpu_custom_call.1} parent=31 // pred_check_branch
          %628 = sbr.rel (%p626) target = $region108
        $region107: #{tpu_custom_call.1} parent=31 // pred_region
          %s630 = ssub.s32 16, 16
          %631 = vsyncadd %s623, %s630
          %s632 = smul.addr %s26, 16
          %s633 = scalar_lea.hbm %s5, %s632
          %s635 = sshll.u32 %s625, 4
          %s636 = int_to_ptr.vmem [resolvable:$true] %s635
          %638 = dma.vmem_to_hbm [thread:$0]  %s636, 16, %s633, %s623
        $region108: #{tpu_custom_call.1} parent=31 // pred_fallthru
          _
      $region32: #{tpu_custom_call.1} parent=5 // pred_fallthru
        _
      %p639 = scmp.le.s32.totalorder 2, %s21
      // Predicated region
      $region109: #{tpu_custom_call.1} parent=5 // pred_check
        %p640 = pneg %p639
      $region110: #{tpu_custom_call.1} parent=5 // pred_check_branch
        %642 = sbr.rel (%p640) target = $region112
      $region111: #{tpu_custom_call.1} parent=5 // pred_region
        %s643 = ssub.s32 %s21, 2
        // Predicated region
        $region113: #{tpu_custom_call.1} parent=111 // pred_check
          %p644 = pneg %p118
        $region114: #{tpu_custom_call.1} parent=111 // pred_check_branch
          %646 = sbr.rel (%p644) target = $region116
        $region115: #{tpu_custom_call.1} parent=111 // pred_region
          %s647 = sand.u32 %s103, 1
          %s648 = scalar_lea.sflag [#allocation8], %s647
          %s649 = sand.u32 %s103, 1
          %s650 = scalar_lea.vmem [#allocation7], %s649
          %651 = dma.done %s648, 16
        $region116: #{tpu_custom_call.1} parent=111 // pred_fallthru
          _
      $region112: #{tpu_custom_call.1} parent=5 // pred_fallthru
        _
    $region6: #{tpu_custom_call.1} parent=1 // loop_footer
      %s25 = sadd.s32 1, %s21
    $region7: #{tpu_custom_call.1} parent=1 // loop_footer_branch
      %20 = sbr.rel target = $region3
    $region8: #{tpu_custom_call.1} parent=1 // loop_exit
      _
    %652 = vsyncpa [#allocation8], 1
    %s653 = scalar_lea.sflag [#allocation8], 1
    %654 = vsyncpa %s653, 1
  %655 = vsyncmov [#allocation3]
  %s656 = vpop.sfrf %655
  %p657 = scmp.eq.s32.totalorder %s656, 0
  %p658 = pneg %p657
  %660 = shalt.err (%p658)
  %s661 = scalar_lea.sflag [#allocation3], 1
  %662 = vsyncmov %s661
  %s663 = vpop.sfrf %662
  %p664 = scmp.eq.s32.totalorder %s663, 0
  %p665 = pneg %p664
  %667 = shalt.err (%p665)

</llo_original>
